<compile_context>
chip_gen: v5e
topology: v5e:2x2
jax: 0.10.0
libtpu: 0.0.40
codegen_flags: <defaults>
</compile_context>

<pallas_src>
import functools
import math

import jax
import jax.numpy as jnp
from jax import lax
from jax.experimental import pallas as pl
from jax.experimental.pallas import tpu as pltpu


# ----------------------------------------------------------------------------
# Fused detector + BAN-core kernel.  One grid step handles a block of `bb`
# batch elements; every matmul is batched over the whole block and (for the
# attention logits) over all glimpses at once.
#
# TODO(synk): the real detector is a full Faster R-CNN (RPN + ROI pooling);
# here region proposals are a fixed spatial grid and pooled_feat comes from a
# linear+ReLU head.  The core's GRU question encoder is approximated by a
# learned projection of word embeddings + mean pooling.
# ----------------------------------------------------------------------------
def ban_fused_kernel(patch_ref, box_ref, qe_ref,
                     wdet_ref, bdet_ref,
                     wvv_ref, wvb_ref, wq_ref,
                     hw_ref, wg_ref,
                     w1_ref, b1_ref, w2_ref, b2_ref,
                     out_ref,
                     *, glimpse, bb, K, T):
    f32 = jnp.float32
    mdt = wdet_ref.dtype                     # matmul (MXU) dtype, bf16 by default

    patches = patch_ref[0]                   # [bb*K, Pp]   (mdt)
    boxes = box_ref[0]                       # [bb*K, 4]    (f32)
    q_tok = qe_ref[0]                        # [bb*T, E]    (mdt)

    # --- detector stand-in: per-region linear feature extractor ------------
    feat = jax.nn.relu(
        jnp.dot(patches, wdet_ref[...], preferred_element_type=f32)
        + bdet_ref[...])                                         # [bb*K, Dvp]

    # --- BAN projections, batched over all regions / tokens ----------------
    # relu([feat | boxes] @ w_v): the 4-wide box contraction runs on the VPU
    # (broadcast FMAs) instead of occupying an MXU pass.
    wvb = wvb_ref[...]                                           # [4, H] f32
    box_term = (boxes[:, 0:1] * wvb[0:1, :] + boxes[:, 1:2] * wvb[1:2, :]
                + boxes[:, 2:3] * wvb[2:3, :] + boxes[:, 3:4] * wvb[3:4, :])
    v_proj = jax.nn.relu(
        jnp.dot(feat.astype(mdt), wvv_ref[...], preferred_element_type=f32)
        + box_term)                                              # [bb*K, H]
    q_proj = jax.nn.relu(
        jnp.dot(q_tok, wq_ref[...], preferred_element_type=f32))  # [bb*T, H]

    H = v_proj.shape[1]
    v3 = v_proj.reshape(bb, K, H)
    q3 = q_proj.reshape(bb, T, H)
    q3_m = q3.astype(mdt)
    s = jnp.mean(q3, axis=1)                                     # [bb, H]

    # --- bilinear attention: all samples batched, all glimpses stacked into
    #     the M dimension of a single matmul per step ------------------------
    hw = hw_ref[...]                                             # [G, H] f32
    v_scaled = (v3[:, None, :, :] * hw[None, :, None, :]).reshape(
        bb, glimpse * K, H)                                      # [bb, G*K, H]
    logits = lax.dot_general(                                    # [bb, G*K, T]
        v_scaled.astype(mdt), q3_m,
        dimension_numbers=(((2,), (2,)), ((0,), (0,))),
        preferred_element_type=f32).reshape(bb, glimpse, K, T)

    # softmax over the whole K*T attention map of each (sample, glimpse).
    # pl.reciprocal(approx=True) runs on the EUP; ~1e-3 rel. error vs exact
    # softmax (acceptable for inference; swap for an exact divide if needed).
    m = jnp.max(jnp.max(logits, axis=3, keepdims=True), axis=2, keepdims=True)
    p = jnp.exp(logits - m)
    denom = jnp.sum(jnp.sum(p, axis=3, keepdims=True), axis=2, keepdims=True)
    att = p * pl.reciprocal(denom, approx=True)                  # [bb, G, K, T]

    # b_emb[b,g,h] = sum_k (sum_t att[b,g,k,t] q[b,t,h]) * v[b,k,h]
    aq = lax.dot_general(                                        # [bb, G*K, H]
        att.reshape(bb, glimpse * K, T).astype(mdt), q3_m,
        dimension_numbers=(((2,), (1,)), ((0,), (0,))),
        preferred_element_type=f32).reshape(bb, glimpse, K, H)
    b_emb = jnp.sum(aq * v3[:, None, :, :], axis=2)              # [bb, G, H]

    # residual glimpse fusion: one [bb, H] @ [H, H] matmul per glimpse
    # (batched over the block, not over samples).
    for g in range(glimpse):                                     # G small/static
        s = s + jax.nn.relu(
            jnp.dot(b_emb[:, g, :].astype(mdt), wg_ref[g],
                    preferred_element_type=f32))

    # --- classifier head, batched over bb rows, lane-dense output ----------
    h1 = jax.nn.relu(
        jnp.dot(s.astype(mdt), w1_ref[...], preferred_element_type=f32)
        + b1_ref[...])
    out = (jnp.dot(h1.astype(mdt), w2_ref[...], preferred_element_type=f32)
           + b2_ref[...])
    out_ref[0] = out.astype(out_ref.dtype)                       # [bb, Ap]


def run_integrated_ban(patches, boxes, q_emb, params,
                       *, matmul_dtype=jnp.bfloat16):
    B, K, P = patches.shape
    _, T, E = q_emb.shape
    G = int(params["glimpse"])
    Dv = params["w_det"].shape[1]
    H = params["w_v"].shape[1]
    Hc = params["w_1"].shape[1]
    A = params["w_2"].shape[1]

    f32 = jnp.float32
    mdt = matmul_dtype

    # Lane-dense padding of the patch / detector-feature / answer dims.
    Pp = pl.cdiv(P, 128) * 128
    Dvp = pl.cdiv(Dv, 128) * 128
    Ap = pl.cdiv(A, 128) * 128

    # Split the (Dv+4, H) projection so the [v | b] concat never materializes;
    # pad weights to the lane-dense widths and cast matmul weights to bf16
    # (biases / VPU-path weights stay f32).
    w_det = jnp.zeros((Pp, Dvp), f32).at[:P, :Dv].set(params["w_det"]).astype(mdt)
    b_det = jnp.zeros((1, Dvp), f32).at[:, :Dv].set(params["b_det"])
    w_vv = jnp.zeros((Dvp, H), f32).at[:Dv, :].set(params["w_v"][:Dv]).astype(mdt)
    w_vb = params["w_v"][Dv:].astype(f32)          # [4, H], VPU path
    w_q = params["w_q"].astype(mdt)
    h_w = params["h_w"].astype(f32)                # VPU scaling
    w_g = params["w_g"].astype(mdt)
    w_1 = params["w_1"].astype(mdt)
    b_1 = params["b_1"].astype(f32)
    w_2 = jnp.zeros((Hc, Ap), f32).at[:, :A].set(params["w_2"]).astype(mdt)
    b_2 = jnp.zeros((1, Ap), f32).at[:, :A].set(params["b_2"])

    # Batch block: fill the MXU M dim (bb*K <= 512) but keep >= 2 grid steps
    # whenever B > 1 so the "parallel" axis can shard over v7x's 2 TensorCores.
    bb = B
    while bb > 1 and (B % bb != 0 or bb * K > 512 or B // bb < 2):
        bb -= 1
    nb = B // bb

    # Reshape to per-block slabs; block shapes equal the full trailing dims so
    # the (8,128) block rule is satisfied for any bb.
    # TODO(synk): at realistic image sizes read patch tiles straight from the
    # NCHW image via a BlockSpec index_map instead of the wrapper transpose+pad.
    patches_f = jnp.pad(patches, ((0, 0), (0, 0), (0, Pp - P))) \
        .astype(mdt).reshape(nb, bb * K, Pp)
    boxes_f = boxes.astype(f32).reshape(nb, bb * K, 4)
    q_f = q_emb.astype(mdt).reshape(nb, bb * T, E)

    kernel = functools.partial(ban_fused_kernel, glimpse=G, bb=bb, K=K, T=T)

    # Explicit scoped-VMEM budget: pipelined blocks are double-buffered; add
    # headroom for kernel intermediates / compiler scratch; cap at v7x's
    # 64 MiB physical VMEM.
    def _nb(shape, dtype):
        return math.prod(shape) * jnp.dtype(dtype).itemsize

    grid_block_bytes = (_nb((1, bb * K, Pp), mdt) + _nb((1, bb * K, 4), f32)
                        + _nb((1, bb * T, E), mdt) + _nb((1, bb, Ap), f32))
    weight_bytes = sum(int(w.size) * w.dtype.itemsize
                       for w in (w_det, b_det, w_vv, w_vb, w_q, h_w, w_g,
                                 w_1, b_1, w_2, b_2))
    vmem_limit = int(min(2 * (grid_block_bytes + weight_bytes) + (32 << 20),
                         64 << 20))

    # TODO(synk): at real BAN sizes (H~1280, G~8) single-buffer the
    # grid-invariant weight specs (pipeline_mode=pl.Buffered(1)) and tile w_g
    # per glimpse (memory_space=pl.ANY + make_async_copy overlapped with the
    # attention math) so the weights fit v7x's 64 MiB VMEM.
    out = pl.pallas_call(
        kernel,
        out_shape=jax.ShapeDtypeStruct((nb, bb, Ap), jnp.float32),
        grid=(nb,),
        in_specs=[
            pl.BlockSpec((1, bb * K, Pp), lambda i: (i, 0, 0)),
            pl.BlockSpec((1, bb * K, 4), lambda i: (i, 0, 0)),
            pl.BlockSpec((1, bb * T, E), lambda i: (i, 0, 0)),
            pl.BlockSpec((Pp, Dvp), lambda i: (0, 0)),
            pl.BlockSpec((1, Dvp), lambda i: (0, 0)),
            pl.BlockSpec((Dvp, H), lambda i: (0, 0)),
            pl.BlockSpec((4, H), lambda i: (0, 0)),
            pl.BlockSpec((E, H), lambda i: (0, 0)),
            pl.BlockSpec((G, H), lambda i: (0, 0)),
            pl.BlockSpec((G, H, H), lambda i: (0, 0, 0)),
            pl.BlockSpec((H, Hc), lambda i: (0, 0)),
            pl.BlockSpec((1, Hc), lambda i: (0, 0)),
            pl.BlockSpec((Hc, Ap), lambda i: (0, 0)),
            pl.BlockSpec((1, Ap), lambda i: (0, 0)),
        ],
        out_specs=pl.BlockSpec((1, bb, Ap), lambda i: (i, 0, 0)),
        compiler_params=pltpu.CompilerParams(
            dimension_semantics=("parallel",),
            vmem_limit_bytes=vmem_limit),
    )(patches_f, boxes_f, q_f,
      w_det, b_det, w_vv, w_vb, w_q, h_w, w_g, w_1, b_1, w_2, b_2)

    return out.reshape(B, Ap)[:, :A]


# ----------------------------------------------------------------------------
# IntegratedBAN forward (glue in plain JAX, all hot math inside one kernel).
# ----------------------------------------------------------------------------
def integrated_ban_forward(im, im_info, q, params):
    B, C, Himg, Wimg = im.shape
    ph = pw = 4
    gh, gw = Himg // ph, Wimg // pw
    K = gh * gw
    P = C * ph * pw

    # --- detector wrapper semantics ----------------------------------------
    gt_boxes = jnp.zeros((B, 1, 1, 5), im.dtype)      # as in the torch module
    num_boxes = jnp.zeros((B, 1), im.dtype)           # (unused by stand-in)
    del gt_boxes, num_boxes

    # NCHW image -> region patches [B, K, P]
    patches = im.reshape(B, C, gh, ph, gw, pw)
    patches = patches.transpose(0, 2, 4, 1, 3, 5).reshape(B, K, P)

    # rois: [B, K, 5] = (batch_idx, x1, y1, x2, y2) on the fixed proposal grid
    ys, xs = jnp.meshgrid(jnp.arange(gh, dtype=jnp.float32),
                          jnp.arange(gw, dtype=jnp.float32), indexing="ij")
    x1 = (xs * pw).reshape(-1)
    y1 = (ys * ph).reshape(-1)
    grid_boxes = jnp.stack([x1, y1, x1 + pw, y1 + ph], axis=-1)   # [K, 4]
    batch_col = jnp.broadcast_to(
        jnp.arange(B, dtype=jnp.float32)[:, None, None], (B, K, 1))
    rois = jnp.concatenate(
        [batch_col, jnp.broadcast_to(grid_boxes[None], (B, K, 4))], axis=-1)

    boxes = rois[:, :, 1:5] / im_info[:, 2][:, None, None]        # boxes /= scale

    # TODO(synk): buatt_utils.threshold_results(cls_prob, feat, boxes, 0.2) and
    # utils.trim_collate produce a ragged, data-dependent number of regions per
    # image; all K fixed-grid regions are kept instead and the (unconsumed)
    # detector classification head was removed for performance.

    # --- core (BAN) ---------------------------------------------------------
    q_emb = params["emb_table"][q]                                # [B, T, E]

    return run_integrated_ban(patches, boxes.astype(jnp.float32),
                              q_emb, params)


def init_params(key):
    C, ph, pw = 3, 4, 4
    P = C * ph * pw            # 48
    Dv = 64                    # detector feature dim
    vocab, E = 100, 64         # question vocab / embedding dim
    H, Hc, A = 128, 128, 32    # core hidden / classifier hidden / answers
    G = 2                      # glimpses

    ks = jax.random.split(key, 10)

    def w(k, shape, scale=0.05):
        return scale * jax.random.normal(k, shape, dtype=jnp.float32)

    return dict(
        glimpse=G,
        w_det=w(ks[0], (P, Dv)), b_det=w(ks[1], (1, Dv)),
        emb_table=w(ks[2], (vocab, E)),
        w_v=w(ks[3], (Dv + 4, H)),
        w_q=w(ks[4], (E, H)),
        h_w=w(ks[5], (G, H)),
        w_g=w(ks[6], (G, H, H)),
        w_1=w(ks[7], (H, Hc)), b_1=w(ks[8], (1, Hc)),
        w_2=w(ks[9], (Hc, A)), b_2=jnp.zeros((1, A), jnp.float32),
    )


if __name__ == "__main__":
    key = jax.random.PRNGKey(0)
    k_im, k_q, k_p = jax.random.split(key, 3)

    B, C, Himg, Wimg = 2, 3, 16, 16
    T = 8

    im = jax.random.normal(k_im, (B, C, Himg, Wimg), dtype=jnp.float32)
    im_info = jnp.array([[16.0, 16.0, 1.0],
                         [16.0, 16.0, 2.0]], dtype=jnp.float32)
    q = jax.random.randint(k_q, (B, T), 0, 100, dtype=jnp.int32)

    params = init_params(k_p)

    out = integrated_ban_forward(im, im_info, q, params)
    out = jax.block_until_ready(out)
    assert out.shape == (B, 32) and bool(jnp.all(jnp.isfinite(out)))
    print("KERNEL_OK")
</pallas_src>

<mosaic_0001>
module attributes {stable_mosaic.version = 11 : i64} {
  func.func @ban_fused_kernel(%arg0: i32, %arg1: memref<1x16x128xbf16, #tpu.memory_space<vmem>>, %arg2: memref<1x16x4xf32, #tpu.memory_space<vmem>>, %arg3: memref<1x8x64xbf16, #tpu.memory_space<vmem>>, %arg4: memref<128x128xbf16, #tpu.memory_space<vmem>>, %arg5: memref<1x128xf32, #tpu.memory_space<vmem>>, %arg6: memref<128x128xbf16, #tpu.memory_space<vmem>>, %arg7: memref<4x128xf32, #tpu.memory_space<vmem>>, %arg8: memref<64x128xbf16, #tpu.memory_space<vmem>>, %arg9: memref<2x128xf32, #tpu.memory_space<vmem>>, %arg10: memref<2x128x128xbf16, #tpu.memory_space<vmem>>, %arg11: memref<128x128xbf16, #tpu.memory_space<vmem>>, %arg12: memref<1x128xf32, #tpu.memory_space<vmem>>, %arg13: memref<128x128xbf16, #tpu.memory_space<vmem>>, %arg14: memref<1x128xf32, #tpu.memory_space<vmem>>, %arg15: memref<1x1x128xf32, #tpu.memory_space<vmem>>) attributes {dimension_semantics = [#tpu.dimension_semantics<parallel>], iteration_bounds = array<i64: 2>, scalar_prefetch = 0 : i64, scratch_operands = 0 : i64, tpu.core_type = #tpu.core_type<tc>, window_params = [{transform_indices = @transform_0, window_bounds = array<i64: 1, 16, 128>}, {transform_indices = @transform_1, window_bounds = array<i64: 1, 16, 4>}, {transform_indices = @transform_2, window_bounds = array<i64: 1, 8, 64>}, {pipeline_mode = #tpu.pipeline_mode<synchronous>, transform_indices = @transform_3, window_bounds = array<i64: 128, 128>}, {pipeline_mode = #tpu.pipeline_mode<synchronous>, transform_indices = @transform_4, window_bounds = array<i64: 1, 128>}, {pipeline_mode = #tpu.pipeline_mode<synchronous>, transform_indices = @transform_5, window_bounds = array<i64: 128, 128>}, {pipeline_mode = #tpu.pipeline_mode<synchronous>, transform_indices = @transform_6, window_bounds = array<i64: 4, 128>}, {pipeline_mode = #tpu.pipeline_mode<synchronous>, transform_indices = @transform_7, window_bounds = array<i64: 64, 128>}, {pipeline_mode = #tpu.pipeline_mode<synchronous>, transform_indices = @transform_8, window_bounds = array<i64: 2, 128>}, {pipeline_mode = #tpu.pipeline_mode<synchronous>, transform_indices = @transform_9, window_bounds = array<i64: 2, 128, 128>}, {pipeline_mode = #tpu.pipeline_mode<synchronous>, transform_indices = @transform_10, window_bounds = array<i64: 128, 128>}, {pipeline_mode = #tpu.pipeline_mode<synchronous>, transform_indices = @transform_11, window_bounds = array<i64: 1, 128>}, {pipeline_mode = #tpu.pipeline_mode<synchronous>, transform_indices = @transform_12, window_bounds = array<i64: 128, 128>}, {pipeline_mode = #tpu.pipeline_mode<synchronous>, transform_indices = @transform_13, window_bounds = array<i64: 1, 128>}, {transform_indices = @transform_14, window_bounds = array<i64: 1, 1, 128>}]} {
    %c0 = arith.constant 0 : index
    %c0_0 = arith.constant 0 : index
    %c0_1 = arith.constant 0 : index
    %0 = vector.load %arg1[%c0, %c0_0, %c0_1] : memref<1x16x128xbf16, #tpu.memory_space<vmem>>, vector<1x16x128xbf16>
    %1 = vector.shape_cast %0 : vector<1x16x128xbf16> to vector<16x128xbf16>
    %c0_2 = arith.constant 0 : index
    %c0_3 = arith.constant 0 : index
    %c0_4 = arith.constant 0 : index
    %2 = vector.load %arg2[%c0_2, %c0_3, %c0_4] : memref<1x16x4xf32, #tpu.memory_space<vmem>>, vector<1x16x4xf32>
    %3 = vector.shape_cast %2 : vector<1x16x4xf32> to vector<16x4xf32>
    %c0_5 = arith.constant 0 : index
    %c0_6 = arith.constant 0 : index
    %c0_7 = arith.constant 0 : index
    %4 = vector.load %arg3[%c0_5, %c0_6, %c0_7] : memref<1x8x64xbf16, #tpu.memory_space<vmem>>, vector<1x8x64xbf16>
    %5 = vector.shape_cast %4 : vector<1x8x64xbf16> to vector<8x64xbf16>
    %c0_8 = arith.constant 0 : index
    %c0_9 = arith.constant 0 : index
    %6 = vector.load %arg4[%c0_8, %c0_9] : memref<128x128xbf16, #tpu.memory_space<vmem>>, vector<128x128xbf16>
    %cst = arith.constant dense<0.000000e+00> : vector<16x128xf32>
    %7 = tpu.matmul %1, %6, %cst {dimension_numbers = #tpu.dot_dimension_numbers<[1], [0], [0], [1], [0, 0, 1, 1], [], []>} : vector<16x128xbf16>, vector<128x128xbf16>, vector<16x128xf32> -> vector<16x128xf32>
    %c0_10 = arith.constant 0 : index
    %c0_11 = arith.constant 0 : index
    %8 = vector.load %arg5[%c0_10, %c0_11] : memref<1x128xf32, #tpu.memory_space<vmem>>, vector<1x128xf32>
    %9 = vector.broadcast %8 : vector<1x128xf32> to vector<16x128xf32>
    %10 = arith.addf %7, %9 : vector<16x128xf32>
    %cst_12 = arith.constant 0.000000e+00 : f32
    %11 = vector.broadcast %cst_12 : f32 to vector<16x128xf32>
    %12 = arith.maximumf %10, %11 : vector<16x128xf32>
    %c0_13 = arith.constant 0 : index
    %c0_14 = arith.constant 0 : index
    %13 = vector.load %arg7[%c0_13, %c0_14] : memref<4x128xf32, #tpu.memory_space<vmem>>, vector<4x128xf32>
    %14 = vector.extract_strided_slice %3 {offsets = [0, 0], sizes = [16, 1], strides = [1, 1]} : vector<16x4xf32> to vector<16x1xf32>
    %15 = vector.extract_strided_slice %13 {offsets = [0, 0], sizes = [1, 128], strides = [1, 1]} : vector<4x128xf32> to vector<1x128xf32>
    %16 = vector.broadcast %14 : vector<16x1xf32> to vector<16x128xf32>
    %17 = vector.broadcast %15 : vector<1x128xf32> to vector<16x128xf32>
    %18 = arith.mulf %16, %17 : vector<16x128xf32>
    %19 = vector.extract_strided_slice %3 {offsets = [0, 1], sizes = [16, 1], strides = [1, 1]} : vector<16x4xf32> to vector<16x1xf32>
    %20 = vector.extract_strided_slice %13 {offsets = [1, 0], sizes = [1, 128], strides = [1, 1]} : vector<4x128xf32> to vector<1x128xf32>
    %21 = vector.broadcast %19 : vector<16x1xf32> to vector<16x128xf32>
    %22 = vector.broadcast %20 : vector<1x128xf32> to vector<16x128xf32>
    %23 = arith.mulf %21, %22 : vector<16x128xf32>
    %24 = arith.addf %18, %23 : vector<16x128xf32>
    %25 = vector.extract_strided_slice %3 {offsets = [0, 2], sizes = [16, 1], strides = [1, 1]} : vector<16x4xf32> to vector<16x1xf32>
    %26 = vector.extract_strided_slice %13 {offsets = [2, 0], sizes = [1, 128], strides = [1, 1]} : vector<4x128xf32> to vector<1x128xf32>
    %27 = vector.broadcast %25 : vector<16x1xf32> to vector<16x128xf32>
    %28 = vector.broadcast %26 : vector<1x128xf32> to vector<16x128xf32>
    %29 = arith.mulf %27, %28 : vector<16x128xf32>
    %30 = arith.addf %24, %29 : vector<16x128xf32>
    %31 = vector.extract_strided_slice %3 {offsets = [0, 3], sizes = [16, 1], strides = [1, 1]} : vector<16x4xf32> to vector<16x1xf32>
    %32 = vector.extract_strided_slice %13 {offsets = [3, 0], sizes = [1, 128], strides = [1, 1]} : vector<4x128xf32> to vector<1x128xf32>
    %33 = vector.broadcast %31 : vector<16x1xf32> to vector<16x128xf32>
    %34 = vector.broadcast %32 : vector<1x128xf32> to vector<16x128xf32>
    %35 = arith.mulf %33, %34 : vector<16x128xf32>
    %36 = arith.addf %30, %35 : vector<16x128xf32>
    %37 = arith.truncf %12 : vector<16x128xf32> to vector<16x128xbf16>
    %c0_15 = arith.constant 0 : index
    %c0_16 = arith.constant 0 : index
    %38 = vector.load %arg6[%c0_15, %c0_16] : memref<128x128xbf16, #tpu.memory_space<vmem>>, vector<128x128xbf16>
    %cst_17 = arith.constant dense<0.000000e+00> : vector<16x128xf32>
    %39 = tpu.matmul %37, %38, %cst_17 {dimension_numbers = #tpu.dot_dimension_numbers<[1], [0], [0], [1], [0, 0, 1, 1], [], []>} : vector<16x128xbf16>, vector<128x128xbf16>, vector<16x128xf32> -> vector<16x128xf32>
    %40 = arith.addf %39, %36 : vector<16x128xf32>
    %cst_18 = arith.constant 0.000000e+00 : f32
    %41 = vector.broadcast %cst_18 : f32 to vector<16x128xf32>
    %42 = arith.maximumf %40, %41 : vector<16x128xf32>
    %c0_19 = arith.constant 0 : index
    %c0_20 = arith.constant 0 : index
    %43 = vector.load %arg8[%c0_19, %c0_20] : memref<64x128xbf16, #tpu.memory_space<vmem>>, vector<64x128xbf16>
    %cst_21 = arith.constant dense<0.000000e+00> : vector<8x128xf32>
    %44 = tpu.matmul %5, %43, %cst_21 {dimension_numbers = #tpu.dot_dimension_numbers<[1], [0], [0], [1], [0, 0, 1, 1], [], []>} : vector<8x64xbf16>, vector<64x128xbf16>, vector<8x128xf32> -> vector<8x128xf32>
    %cst_22 = arith.constant 0.000000e+00 : f32
    %45 = vector.broadcast %cst_22 : f32 to vector<8x128xf32>
    %46 = arith.maximumf %44, %45 : vector<8x128xf32>
    %47 = vector.shape_cast %42 : vector<16x128xf32> to vector<1x16x128xf32>
    %48 = vector.shape_cast %46 : vector<8x128xf32> to vector<1x8x128xf32>
    %49 = arith.truncf %48 : vector<1x8x128xf32> to vector<1x8x128xbf16>
    %cst_23 = arith.constant dense<0.000000e+00> : vector<1x128xf32>
    %50 = vector.multi_reduction <add>, %48, %cst_23 [1] : vector<1x8x128xf32> to vector<1x128xf32>
    %cst_24 = arith.constant 8.000000e+00 : f32
    %51 = vector.broadcast %cst_24 : f32 to vector<1x128xf32>
    %52 = arith.divf %50, %51 : vector<1x128xf32>
    %c0_25 = arith.constant 0 : index
    %c0_26 = arith.constant 0 : index
    %53 = vector.load %arg9[%c0_25, %c0_26] : memref<2x128xf32, #tpu.memory_space<vmem>>, vector<2x128xf32>
    %54 = vector.shape_cast %47 : vector<1x16x128xf32> to vector<1x1x16x128xf32>
    %55 = vector.shape_cast %53 : vector<2x128xf32> to vector<1x2x1x128xf32>
    %56 = vector.broadcast %54 : vector<1x1x16x128xf32> to vector<1x2x16x128xf32>
    %57 = vector.broadcast %55 : vector<1x2x1x128xf32> to vector<1x2x16x128xf32>
    %58 = arith.mulf %56, %57 : vector<1x2x16x128xf32>
    %59 = vector.shape_cast %58 : vector<1x2x16x128xf32> to vector<1x32x128xf32>
    %60 = arith.truncf %59 : vector<1x32x128xf32> to vector<1x32x128xbf16>
    %cst_27 = arith.constant dense<0.000000e+00> : vector<1x32x8xf32>
    %61 = tpu.matmul %60, %49, %cst_27 {dimension_numbers = #tpu.dot_dimension_numbers<[2], [2], [1], [1], [0, 0, 0, 1, 1, 1], [0], [0]>} : vector<1x32x128xbf16>, vector<1x8x128xbf16>, vector<1x32x8xf32> -> vector<1x32x8xf32>
    %62 = vector.shape_cast %61 : vector<1x32x8xf32> to vector<1x2x16x8xf32>
    %cst_28 = arith.constant dense<0xFF800000> : vector<1x2x16xf32>
    %63 = vector.multi_reduction <maximumf>, %62, %cst_28 [3] : vector<1x2x16x8xf32> to vector<1x2x16xf32>
    %64 = vector.shape_cast %63 : vector<1x2x16xf32> to vector<1x2x16x1xf32>
    %cst_29 = arith.constant dense<0xFF800000> : vector<1x2x1xf32>
    %65 = vector.multi_reduction <maximumf>, %64, %cst_29 [2] : vector<1x2x16x1xf32> to vector<1x2x1xf32>
    %66 = vector.shape_cast %65 : vector<1x2x1xf32> to vector<1x2x1x1xf32>
    %67 = vector.broadcast %66 : vector<1x2x1x1xf32> to vector<1x2x16x8xf32>
    %68 = arith.subf %62, %67 : vector<1x2x16x8xf32>
    %69 = math.exp %68 : vector<1x2x16x8xf32>
    %cst_30 = arith.constant dense<0.000000e+00> : vector<1x2x16xf32>
    %70 = vector.multi_reduction <add>, %69, %cst_30 [3] : vector<1x2x16x8xf32> to vector<1x2x16xf32>
    %71 = vector.shape_cast %70 : vector<1x2x16xf32> to vector<1x2x16x1xf32>
    %cst_31 = arith.constant dense<0.000000e+00> : vector<1x2x1xf32>
    %72 = vector.multi_reduction <add>, %71, %cst_31 [2] : vector<1x2x16x1xf32> to vector<1x2x1xf32>
    %73 = vector.shape_cast %72 : vector<1x2x1xf32> to vector<1x2x1x1xf32>
    %74 = tpu.reciprocal %73 {approx = true} : vector<1x2x1x1xf32> -> vector<1x2x1x1xf32>
    %75 = vector.broadcast %74 : vector<1x2x1x1xf32> to vector<1x2x16x8xf32>
    %76 = arith.mulf %69, %75 : vector<1x2x16x8xf32>
    %77 = vector.shape_cast %76 : vector<1x2x16x8xf32> to vector<1x32x8xf32>
    %78 = arith.truncf %77 : vector<1x32x8xf32> to vector<1x32x8xbf16>
    %cst_32 = arith.constant dense<0.000000e+00> : vector<1x32x128xf32>
    %79 = tpu.matmul %78, %49, %cst_32 {dimension_numbers = #tpu.dot_dimension_numbers<[2], [1], [1], [2], [0, 0, 0, 1, 1, 2], [0], [0]>} : vector<1x32x8xbf16>, vector<1x8x128xbf16>, vector<1x32x128xf32> -> vector<1x32x128xf32>
    %80 = vector.shape_cast %79 : vector<1x32x128xf32> to vector<1x2x16x128xf32>
    %81 = vector.shape_cast %47 : vector<1x16x128xf32> to vector<1x1x16x128xf32>
    %82 = vector.broadcast %81 : vector<1x1x16x128xf32> to vector<1x2x16x128xf32>
    %83 = arith.mulf %80, %82 : vector<1x2x16x128xf32>
    %cst_33 = arith.constant dense<0.000000e+00> : vector<1x2x128xf32>
    %84 = vector.multi_reduction <add>, %83, %cst_33 [2] : vector<1x2x16x128xf32> to vector<1x2x128xf32>
    %85 = vector.extract_strided_slice %84 {offsets = [0, 0, 0], sizes = [1, 1, 128], strides = [1, 1, 1]} : vector<1x2x128xf32> to vector<1x1x128xf32>
    %86 = vector.shape_cast %85 : vector<1x1x128xf32> to vector<1x128xf32>
    %87 = arith.truncf %86 : vector<1x128xf32> to vector<1x128xbf16>
    %c0_34 = arith.constant 0 : index
    %c0_35 = arith.constant 0 : index
    %c0_36 = arith.constant 0 : index
    %88 = vector.load %arg10[%c0_34, %c0_35, %c0_36] : memref<2x128x128xbf16, #tpu.memory_space<vmem>>, vector<1x128x128xbf16>
    %89 = vector.shape_cast %88 : vector<1x128x128xbf16> to vector<128x128xbf16>
    %cst_37 = arith.constant dense<0.000000e+00> : vector<1x128xf32>
    %90 = tpu.matmul %87, %89, %cst_37 {dimension_numbers = #tpu.dot_dimension_numbers<[1], [0], [0], [1], [0, 0, 1, 1], [], []>} : vector<1x128xbf16>, vector<128x128xbf16>, vector<1x128xf32> -> vector<1x128xf32>
    %cst_38 = arith.constant 0.000000e+00 : f32
    %91 = vector.broadcast %cst_38 : f32 to vector<1x128xf32>
    %92 = arith.maximumf %90, %91 : vector<1x128xf32>
    %93 = arith.addf %52, %92 : vector<1x128xf32>
    %94 = vector.extract_strided_slice %84 {offsets = [0, 1, 0], sizes = [1, 1, 128], strides = [1, 1, 1]} : vector<1x2x128xf32> to vector<1x1x128xf32>
    %95 = vector.shape_cast %94 : vector<1x1x128xf32> to vector<1x128xf32>
    %96 = arith.truncf %95 : vector<1x128xf32> to vector<1x128xbf16>
    %c1 = arith.constant 1 : index
    %c0_39 = arith.constant 0 : index
    %c0_40 = arith.constant 0 : index
    %97 = vector.load %arg10[%c1, %c0_39, %c0_40] : memref<2x128x128xbf16, #tpu.memory_space<vmem>>, vector<1x128x128xbf16>
    %98 = vector.shape_cast %97 : vector<1x128x128xbf16> to vector<128x128xbf16>
    %cst_41 = arith.constant dense<0.000000e+00> : vector<1x128xf32>
    %99 = tpu.matmul %96, %98, %cst_41 {dimension_numbers = #tpu.dot_dimension_numbers<[1], [0], [0], [1], [0, 0, 1, 1], [], []>} : vector<1x128xbf16>, vector<128x128xbf16>, vector<1x128xf32> -> vector<1x128xf32>
    %cst_42 = arith.constant 0.000000e+00 : f32
    %100 = vector.broadcast %cst_42 : f32 to vector<1x128xf32>
    %101 = arith.maximumf %99, %100 : vector<1x128xf32>
    %102 = arith.addf %93, %101 : vector<1x128xf32>
    %103 = arith.truncf %102 : vector<1x128xf32> to vector<1x128xbf16>
    %c0_43 = arith.constant 0 : index
    %c0_44 = arith.constant 0 : index
    %104 = vector.load %arg11[%c0_43, %c0_44] : memref<128x128xbf16, #tpu.memory_space<vmem>>, vector<128x128xbf16>
    %cst_45 = arith.constant dense<0.000000e+00> : vector<1x128xf32>
    %105 = tpu.matmul %103, %104, %cst_45 {dimension_numbers = #tpu.dot_dimension_numbers<[1], [0], [0], [1], [0, 0, 1, 1], [], []>} : vector<1x128xbf16>, vector<128x128xbf16>, vector<1x128xf32> -> vector<1x128xf32>
    %c0_46 = arith.constant 0 : index
    %c0_47 = arith.constant 0 : index
    %106 = vector.load %arg12[%c0_46, %c0_47] : memref<1x128xf32, #tpu.memory_space<vmem>>, vector<1x128xf32>
    %107 = arith.addf %105, %106 : vector<1x128xf32>
    %cst_48 = arith.constant 0.000000e+00 : f32
    %108 = vector.broadcast %cst_48 : f32 to vector<1x128xf32>
    %109 = arith.maximumf %107, %108 : vector<1x128xf32>
    %110 = arith.truncf %109 : vector<1x128xf32> to vector<1x128xbf16>
    %c0_49 = arith.constant 0 : index
    %c0_50 = arith.constant 0 : index
    %111 = vector.load %arg13[%c0_49, %c0_50] : memref<128x128xbf16, #tpu.memory_space<vmem>>, vector<128x128xbf16>
    %cst_51 = arith.constant dense<0.000000e+00> : vector<1x128xf32>
    %112 = tpu.matmul %110, %111, %cst_51 {dimension_numbers = #tpu.dot_dimension_numbers<[1], [0], [0], [1], [0, 0, 1, 1], [], []>} : vector<1x128xbf16>, vector<128x128xbf16>, vector<1x128xf32> -> vector<1x128xf32>
    %c0_52 = arith.constant 0 : index
    %c0_53 = arith.constant 0 : index
    %113 = vector.load %arg14[%c0_52, %c0_53] : memref<1x128xf32, #tpu.memory_space<vmem>>, vector<1x128xf32>
    %114 = arith.addf %112, %113 : vector<1x128xf32>
    %c0_54 = arith.constant 0 : index
    %c0_55 = arith.constant 0 : index
    %c0_56 = arith.constant 0 : index
    %115 = vector.load %arg15[%c0_54, %c0_55, %c0_56] : memref<1x1x128xf32, #tpu.memory_space<vmem>>, vector<1x1x128xf32>
    %116 = vector.shape_cast %115 : vector<1x1x128xf32> to vector<1x128xf32>
    %117 = vector.shape_cast %114 : vector<1x128xf32> to vector<1x1x128xf32>
    tpu.vector_store %arg15[%c0_54, %c0_55, %c0_56], %117 {strides = array<i32>} : memref<1x1x128xf32, #tpu.memory_space<vmem>>, vector<1x1x128xf32>,
    return
  }
  func.func @transform_0(%arg0: i32) -> (i32, i32, i32) {
    %c0_i32 = arith.constant 0 : i32
    %c0_i32_0 = arith.constant 0 : i32
    %c0_i32_1 = arith.constant 0 : i32
    return %arg0, %c0_i32, %c0_i32_0 : i32, i32, i32
  }
  func.func @transform_1(%arg0: i32) -> (i32, i32, i32) {
    %c0_i32 = arith.constant 0 : i32
    %c0_i32_0 = arith.constant 0 : i32
    %c0_i32_1 = arith.constant 0 : i32
    return %arg0, %c0_i32, %c0_i32_0 : i32, i32, i32
  }
  func.func @transform_2(%arg0: i32) -> (i32, i32, i32) {
    %c0_i32 = arith.constant 0 : i32
    %c0_i32_0 = arith.constant 0 : i32
    %c0_i32_1 = arith.constant 0 : i32
    return %arg0, %c0_i32, %c0_i32_0 : i32, i32, i32
  }
  func.func @transform_3(%arg0: i32) -> (i32, i32) {
    %c0_i32 = arith.constant 0 : i32
    %c0_i32_0 = arith.constant 0 : i32
    %c0_i32_1 = arith.constant 0 : i32
    return %c0_i32, %c0_i32_0 : i32, i32
  }
  func.func @transform_4(%arg0: i32) -> (i32, i32) {
    %c0_i32 = arith.constant 0 : i32
    %c0_i32_0 = arith.constant 0 : i32
    %c0_i32_1 = arith.constant 0 : i32
    return %c0_i32, %c0_i32_0 : i32, i32
  }
  func.func @transform_5(%arg0: i32) -> (i32, i32) {
    %c0_i32 = arith.constant 0 : i32
    %c0_i32_0 = arith.constant 0 : i32
    %c0_i32_1 = arith.constant 0 : i32
    return %c0_i32, %c0_i32_0 : i32, i32
  }
  func.func @transform_6(%arg0: i32) -> (i32, i32) {
    %c0_i32 = arith.constant 0 : i32
    %c0_i32_0 = arith.constant 0 : i32
    %c0_i32_1 = arith.constant 0 : i32
    return %c0_i32, %c0_i32_0 : i32, i32
  }
  func.func @transform_7(%arg0: i32) -> (i32, i32) {
    %c0_i32 = arith.constant 0 : i32
    %c0_i32_0 = arith.constant 0 : i32
    %c0_i32_1 = arith.constant 0 : i32
    return %c0_i32, %c0_i32_0 : i32, i32
  }
  func.func @transform_8(%arg0: i32) -> (i32, i32) {
    %c0_i32 = arith.constant 0 : i32
    %c0_i32_0 = arith.constant 0 : i32
    %c0_i32_1 = arith.constant 0 : i32
    return %c0_i32, %c0_i32_0 : i32, i32
  }
  func.func @transform_9(%arg0: i32) -> (i32, i32, i32) {
    %c0_i32 = arith.constant 0 : i32
    %c0_i32_0 = arith.constant 0 : i32
    %c0_i32_1 = arith.constant 0 : i32
    %c0_i32_2 = arith.constant 0 : i32
    return %c0_i32, %c0_i32_0, %c0_i32_1 : i32, i32, i32
  }
  func.func @transform_10(%arg0: i32) -> (i32, i32) {
    %c0_i32 = arith.constant 0 : i32
    %c0_i32_0 = arith.constant 0 : i32
    %c0_i32_1 = arith.constant 0 : i32
    return %c0_i32, %c0_i32_0 : i32, i32
  }
  func.func @transform_11(%arg0: i32) -> (i32, i32) {
    %c0_i32 = arith.constant 0 : i32
    %c0_i32_0 = arith.constant 0 : i32
    %c0_i32_1 = arith.constant 0 : i32
    return %c0_i32, %c0_i32_0 : i32, i32
  }
  func.func @transform_12(%arg0: i32) -> (i32, i32) {
    %c0_i32 = arith.constant 0 : i32
    %c0_i32_0 = arith.constant 0 : i32
    %c0_i32_1 = arith.constant 0 : i32
    return %c0_i32, %c0_i32_0 : i32, i32
  }
  func.func @transform_13(%arg0: i32) -> (i32, i32) {
    %c0_i32 = arith.constant 0 : i32
    %c0_i32_0 = arith.constant 0 : i32
    %c0_i32_1 = arith.constant 0 : i32
    return %c0_i32, %c0_i32_0 : i32, i32
  }
  func.func @transform_14(%arg0: i32) -> (i32, i32, i32) {
    %c0_i32 = arith.constant 0 : i32
    %c0_i32_0 = arith.constant 0 : i32
    %c0_i32_1 = arith.constant 0 : i32
    return %arg0, %c0_i32, %c0_i32_0 : i32, i32, i32
  }
}

</mosaic_0001>

<llo_original>
// kernel: tpu_custom_call.1
$region0: #{tpu_custom_call.1}
  #allocation0 [shape = 'u32[]', space=smem, size = 0x4, offset = 0x4, fixed_abs, tag = 'smem constant byte address 0x4 - core index']
  #allocation1 [shape = 'u32[72,128]{1,0:T(1,128)}', space=vmem, size = 0x9000, scoped, tag = 'internal scratch']
  %s0 = inlined_call_operand.hbm [shape: bf16[2,16,128], index: 0, kind: input, shape index: {}]
  %s1 = inlined_call_operand.vmem [shape: f32[2,16,4], index: 1, kind: input, shape index: {}]
  %s2 = inlined_call_operand.vmem [shape: bf16[2,8,64], index: 2, kind: input, shape index: {}]
  %s3 = inlined_call_operand.hbm [shape: bf16[128,128], index: 3, kind: input, shape index: {}]
  %s4 = inlined_call_operand.hbm [shape: f32[1,128], index: 4, kind: input, shape index: {}]
  %s5 = inlined_call_operand.hbm [shape: bf16[128,128], index: 5, kind: input, shape index: {}]
  %s6 = inlined_call_operand.vmem [shape: f32[4,128], index: 6, kind: input, shape index: {}]
  %s7 = inlined_call_operand.vmem [shape: bf16[64,128], index: 7, kind: input, shape index: {}]
  %s8 = inlined_call_operand.vmem [shape: f32[2,128], index: 8, kind: input, shape index: {}]
  %s9 = inlined_call_operand.hbm [shape: bf16[2,128,128], index: 9, kind: input, shape index: {}]
  %s10 = inlined_call_operand.hbm [shape: bf16[128,128], index: 10, kind: input, shape index: {}]
  %s11 = inlined_call_operand.vmem [shape: f32[1,128], index: 11, kind: input, shape index: {}]
  %s12 = inlined_call_operand.hbm [shape: bf16[128,128], index: 12, kind: input, shape index: {}]
  %s13 = inlined_call_operand.vmem [shape: f32[1,128], index: 13, kind: input, shape index: {}]
  %s14 = inlined_call_operand.hbm [shape: f32[2,1,128], index: 14, kind: output, shape index: {}]
  %s15 = sld [smem:[#allocation0]]
  $region117: #{tpu_custom_call.1} parent=0
    _
  %s17 = ssub.s32 1, %s15
  %s18 = scalar_select 0, %s17, %s15
  $region1: #{tpu_custom_call.1} parent=0
    #allocation2 [shape = 'u8[8192]{0}', space=vmem, size = 0x2000, scoped, tag = 'input window, operand 0']
    #allocation3 [shape = 's32[2]{0}', space=sflag, size = 0x8, scoped, tag = 'scoped memory for tpu_custom_call.1']
    #allocation4 [shape = 's32[2]{0}', space=sflag, size = 0x8, scoped, tag = 'scoped memory for tpu_custom_call.1']
    #allocation5 [shape = 'u8[32768]{0}', space=vmem, size = 0x8000, scoped, tag = 'input window, operand 3, single buffered']
    #allocation6 [shape = 's32[1]{0}', space=sflag, size = 0x4, scoped, tag = 'scoped memory for tpu_custom_call.1']
    #allocation7 [shape = 'u8[512]{0}', space=vmem, size = 0x400, scoped, tag = 'input window, operand 4, single buffered']
    #allocation8 [shape = 'u8[32768]{0}', space=vmem, size = 0x8000, scoped, tag = 'input window, operand 5, single buffered']
    #allocation9 [shape = 's32[1]{0}', space=sflag, size = 0x4, scoped, tag = 'scoped memory for tpu_custom_call.1']
    #allocation10 [shape = 'u8[65536]{0}', space=vmem, size = 0x10000, scoped, tag = 'input window, operand 9, single buffered']
    #allocation11 [shape = 'u8[32768]{0}', space=vmem, size = 0x8000, scoped, tag = 'input window, operand 10, single buffered']
    #allocation12 [shape = 's32[1]{0}', space=sflag, size = 0x4, scoped, tag = 'scoped memory for tpu_custom_call.1']
    #allocation13 [shape = 'u8[32768]{0}', space=vmem, size = 0x8000, scoped, tag = 'input window, operand 12, single buffered']
    #allocation14 [shape = 'u8[1024]{0}', space=vmem, size = 0x400, scoped, tag = 'output window, operand 0']
    %19 = vsyncpa [#allocation3], 0
    %s20 = scalar_lea.sflag [#allocation3], 1
    %21 = vsyncpa %s20, 0
    %22 = vsyncpa [#allocation6], 0
    %23 = vsyncpa [#allocation9], 0
    %24 = vsyncpa [#allocation12], 0
    %25 = vsyncpa [#allocation4], 0
    %s26 = scalar_lea.sflag [#allocation4], 1
    %27 = vsyncpa %s26, 0
    loop: start=0, step=1, limit=4
    $region2: #{tpu_custom_call.1} parent=1 // loop_pre_header
      _
    $region3: #{tpu_custom_call.1} parent=1 // loop_header
      %s29 = sphi 0, %s33
      %p30 = scmp.ge.s32.totalorder %s29, 4
      %s39 = sphi 0, %s41
      %s42 = sphi 0, %s39
      %s43 = sphi 0, %s42
      %s59 = sphi 0, %s43
      %s65 = sphi 0, %s67
      %s68 = sphi 0, %s65
      %s69 = sphi 0, %s68
      %s85 = sphi 0, %s69
      %s91 = sphi 0, %s93
      %s94 = sphi 0, %s91
      %s95 = sphi 0, %s94
      %s111 = sphi 0, %s95
      %s115 = sphi 0, %s115
      %s117 = sphi 0, %s115
      %s118 = sphi 0, %s117
      %s132 = sphi 0, %s118
      %s136 = sphi 0, %s136
      %s138 = sphi 0, %s136
      %s139 = sphi 0, %s138
      %s153 = sphi 0, %s139
      %s157 = sphi 0, %s157
      %s159 = sphi 0, %s157
      %s160 = sphi 0, %s159
      %s174 = sphi 0, %s160
      %s178 = sphi 0, %s178
      %s180 = sphi 0, %s178
      %s181 = sphi 0, %s180
      %s195 = sphi 0, %s181
      %s199 = sphi 0, %s199
      %s201 = sphi 0, %s199
      %s202 = sphi 0, %s201
      %s216 = sphi 0, %s202
      %s220 = sphi 0, %s220
      %s222 = sphi 0, %s220
      %s223 = sphi 0, %s222
      %s237 = sphi 0, %s223
      %s241 = sphi 0, %s241
      %s243 = sphi 0, %s241
      %s244 = sphi 0, %s243
      %s258 = sphi 0, %s244
      %s262 = sphi 0, %s262
      %s264 = sphi 0, %s262
      %s265 = sphi 0, %s264
      %s279 = sphi 0, %s265
      %s283 = sphi 0, %s283
      %s285 = sphi 0, %s283
      %s286 = sphi 0, %s285
      %s300 = sphi 0, %s286
      %s304 = sphi 0, %s304
      %s306 = sphi 0, %s304
      %s307 = sphi 0, %s306
      %s321 = sphi 0, %s307
      %s325 = sphi 0, %s325
      %s327 = sphi 0, %s325
      %s328 = sphi 0, %s327
      %s342 = sphi 0, %s328
      %s348 = sphi 0, %s350
      %s351 = sphi 0, %s348
      %s352 = sphi 0, %s351
      %s368 = sphi 0, %s352
    $region4: #{tpu_custom_call.1} parent=1 // loop_header_branch
      %32 = sbr.rel (%p30) target = $region8
    $region5: #{tpu_custom_call.1} parent=1 // loop_body
      %s34 = ssub.s32 %s29, 1
      %s35 = ssub.s32 %s29, 2
      %s36 = sadd.s32 %s29, 1
      %s37 = ssub.s32 %s29, %s36
      %p38 = scmp.eq.s32.totalorder %s37, 0
      %s40 = sadd.s32 %s39, 1
      %s41 = scalar_select %p38, %s39, %s40
      %p44 = pneg %p38
      %p45 = scmp.eq.s32.totalorder %s29, 1
      %p46 = por %p44, %p45
      %p47 = scmp.ne.s32.totalorder %s39, %s42
      %p48 = scmp.eq.s32.totalorder %s29, 0
      %p49 = por %p47, %p48
      %p50 = scmp.ne.s32.totalorder %s39, %s42
      %p51 = scmp.eq.s32.totalorder %s34, 1
      %p52 = por %p50, %p51
      %p53 = scmp.ne.s32.totalorder %s42, %s43
      %p54 = scmp.eq.s32.totalorder %s34, 0
      %p55 = por %p53, %p54
      %p56 = scmp.ne.s32.totalorder %s42, %s43
      %p57 = scmp.eq.s32.totalorder %s35, 1
      %p58 = por %p56, %p57
      %p60 = scmp.ne.s32.totalorder %s43, %s59
      %p61 = scmp.eq.s32.totalorder %s35, 0
      %p62 = por %p60, %p61
      %s63 = ssub.s32 %s29, %s36
      %p64 = scmp.eq.s32.totalorder %s63, 0
      %s66 = sadd.s32 %s65, 1
      %s67 = scalar_select %p64, %s65, %s66
      %p70 = pneg %p64
      %p71 = scmp.eq.s32.totalorder %s29, 1
      %p72 = por %p70, %p71
      %p73 = scmp.ne.s32.totalorder %s65, %s68
      %p74 = scmp.eq.s32.totalorder %s29, 0
      %p75 = por %p73, %p74
      %p76 = scmp.ne.s32.totalorder %s65, %s68
      %p77 = scmp.eq.s32.totalorder %s34, 1
      %p78 = por %p76, %p77
      %p79 = scmp.ne.s32.totalorder %s68, %s69
      %p80 = scmp.eq.s32.totalorder %s34, 0
      %p81 = por %p79, %p80
      %p82 = scmp.ne.s32.totalorder %s68, %s69
      %p83 = scmp.eq.s32.totalorder %s35, 1
      %p84 = por %p82, %p83
      %p86 = scmp.ne.s32.totalorder %s69, %s85
      %p87 = scmp.eq.s32.totalorder %s35, 0
      %p88 = por %p86, %p87
      %s89 = ssub.s32 %s29, %s36
      %p90 = scmp.eq.s32.totalorder %s89, 0
      %s92 = sadd.s32 %s91, 1
      %s93 = scalar_select %p90, %s91, %s92
      %p96 = pneg %p90
      %p97 = scmp.eq.s32.totalorder %s29, 1
      %p98 = por %p96, %p97
      %p99 = scmp.ne.s32.totalorder %s91, %s94
      %p100 = scmp.eq.s32.totalorder %s29, 0
      %p101 = por %p99, %p100
      %p102 = scmp.ne.s32.totalorder %s91, %s94
      %p103 = scmp.eq.s32.totalorder %s34, 1
      %p104 = por %p102, %p103
      %p105 = scmp.ne.s32.totalorder %s94, %s95
      %p106 = scmp.eq.s32.totalorder %s34, 0
      %p107 = por %p105, %p106
      %p108 = scmp.ne.s32.totalorder %s94, %s95
      %p109 = scmp.eq.s32.totalorder %s35, 1
      %p110 = por %p108, %p109
      %p112 = scmp.ne.s32.totalorder %s95, %s111
      %p113 = scmp.eq.s32.totalorder %s35, 0
      %p114 = por %p112, %p113
      %s116 = sadd.s32 %s115, 1
      %p119 = scmp.eq.s32.totalorder %s29, 1
      %p120 = scmp.ne.s32.totalorder %s115, %s117
      %p121 = scmp.eq.s32.totalorder %s29, 0
      %p122 = por %p120, %p121
      %p123 = scmp.ne.s32.totalorder %s115, %s117
      %p124 = scmp.eq.s32.totalorder %s34, 1
      %p125 = por %p123, %p124
      %p126 = scmp.ne.s32.totalorder %s117, %s118
      %p127 = scmp.eq.s32.totalorder %s34, 0
      %p128 = por %p126, %p127
      %p129 = scmp.ne.s32.totalorder %s117, %s118
      %p130 = scmp.eq.s32.totalorder %s35, 1
      %p131 = por %p129, %p130
      %p133 = scmp.ne.s32.totalorder %s118, %s132
      %p134 = scmp.eq.s32.totalorder %s35, 0
      %p135 = por %p133, %p134
      %s137 = sadd.s32 %s136, 1
      %p140 = scmp.eq.s32.totalorder %s29, 1
      %p141 = scmp.ne.s32.totalorder %s136, %s138
      %p142 = scmp.eq.s32.totalorder %s29, 0
      %p143 = por %p141, %p142
      %p144 = scmp.ne.s32.totalorder %s136, %s138
      %p145 = scmp.eq.s32.totalorder %s34, 1
      %p146 = por %p144, %p145
      %p147 = scmp.ne.s32.totalorder %s138, %s139
      %p148 = scmp.eq.s32.totalorder %s34, 0
      %p149 = por %p147, %p148
      %p150 = scmp.ne.s32.totalorder %s138, %s139
      %p151 = scmp.eq.s32.totalorder %s35, 1
      %p152 = por %p150, %p151
      %p154 = scmp.ne.s32.totalorder %s139, %s153
      %p155 = scmp.eq.s32.totalorder %s35, 0
      %p156 = por %p154, %p155
      %s158 = sadd.s32 %s157, 1
      %p161 = scmp.eq.s32.totalorder %s29, 1
      %p162 = scmp.ne.s32.totalorder %s157, %s159
      %p163 = scmp.eq.s32.totalorder %s29, 0
      %p164 = por %p162, %p163
      %p165 = scmp.ne.s32.totalorder %s157, %s159
      %p166 = scmp.eq.s32.totalorder %s34, 1
      %p167 = por %p165, %p166
      %p168 = scmp.ne.s32.totalorder %s159, %s160
      %p169 = scmp.eq.s32.totalorder %s34, 0
      %p170 = por %p168, %p169
      %p171 = scmp.ne.s32.totalorder %s159, %s160
      %p172 = scmp.eq.s32.totalorder %s35, 1
      %p173 = por %p171, %p172
      %p175 = scmp.ne.s32.totalorder %s160, %s174
      %p176 = scmp.eq.s32.totalorder %s35, 0
      %p177 = por %p175, %p176
      %s179 = sadd.s32 %s178, 1
      %p182 = scmp.eq.s32.totalorder %s29, 1
      %p183 = scmp.ne.s32.totalorder %s178, %s180
      %p184 = scmp.eq.s32.totalorder %s29, 0
      %p185 = por %p183, %p184
      %p186 = scmp.ne.s32.totalorder %s178, %s180
      %p187 = scmp.eq.s32.totalorder %s34, 1
      %p188 = por %p186, %p187
      %p189 = scmp.ne.s32.totalorder %s180, %s181
      %p190 = scmp.eq.s32.totalorder %s34, 0
      %p191 = por %p189, %p190
      %p192 = scmp.ne.s32.totalorder %s180, %s181
      %p193 = scmp.eq.s32.totalorder %s35, 1
      %p194 = por %p192, %p193
      %p196 = scmp.ne.s32.totalorder %s181, %s195
      %p197 = scmp.eq.s32.totalorder %s35, 0
      %p198 = por %p196, %p197
      %s200 = sadd.s32 %s199, 1
      %p203 = scmp.eq.s32.totalorder %s29, 1
      %p204 = scmp.ne.s32.totalorder %s199, %s201
      %p205 = scmp.eq.s32.totalorder %s29, 0
      %p206 = por %p204, %p205
      %p207 = scmp.ne.s32.totalorder %s199, %s201
      %p208 = scmp.eq.s32.totalorder %s34, 1
      %p209 = por %p207, %p208
      %p210 = scmp.ne.s32.totalorder %s201, %s202
      %p211 = scmp.eq.s32.totalorder %s34, 0
      %p212 = por %p210, %p211
      %p213 = scmp.ne.s32.totalorder %s201, %s202
      %p214 = scmp.eq.s32.totalorder %s35, 1
      %p215 = por %p213, %p214
      %p217 = scmp.ne.s32.totalorder %s202, %s216
      %p218 = scmp.eq.s32.totalorder %s35, 0
      %p219 = por %p217, %p218
      %s221 = sadd.s32 %s220, 1
      %p224 = scmp.eq.s32.totalorder %s29, 1
      %p225 = scmp.ne.s32.totalorder %s220, %s222
      %p226 = scmp.eq.s32.totalorder %s29, 0
      %p227 = por %p225, %p226
      %p228 = scmp.ne.s32.totalorder %s220, %s222
      %p229 = scmp.eq.s32.totalorder %s34, 1
      %p230 = por %p228, %p229
      %p231 = scmp.ne.s32.totalorder %s222, %s223
      %p232 = scmp.eq.s32.totalorder %s34, 0
      %p233 = por %p231, %p232
      %p234 = scmp.ne.s32.totalorder %s222, %s223
      %p235 = scmp.eq.s32.totalorder %s35, 1
      %p236 = por %p234, %p235
      %p238 = scmp.ne.s32.totalorder %s223, %s237
      %p239 = scmp.eq.s32.totalorder %s35, 0
      %p240 = por %p238, %p239
      %s242 = sadd.s32 %s241, 1
      %p245 = scmp.eq.s32.totalorder %s29, 1
      %p246 = scmp.ne.s32.totalorder %s241, %s243
      %p247 = scmp.eq.s32.totalorder %s29, 0
      %p248 = por %p246, %p247
      %p249 = scmp.ne.s32.totalorder %s241, %s243
      %p250 = scmp.eq.s32.totalorder %s34, 1
      %p251 = por %p249, %p250
      %p252 = scmp.ne.s32.totalorder %s243, %s244
      %p253 = scmp.eq.s32.totalorder %s34, 0
      %p254 = por %p252, %p253
      %p255 = scmp.ne.s32.totalorder %s243, %s244
      %p256 = scmp.eq.s32.totalorder %s35, 1
      %p257 = por %p255, %p256
      %p259 = scmp.ne.s32.totalorder %s244, %s258
      %p260 = scmp.eq.s32.totalorder %s35, 0
      %p261 = por %p259, %p260
      %s263 = sadd.s32 %s262, 1
      %p266 = scmp.eq.s32.totalorder %s29, 1
      %p267 = scmp.ne.s32.totalorder %s262, %s264
      %p268 = scmp.eq.s32.totalorder %s29, 0
      %p269 = por %p267, %p268
      %p270 = scmp.ne.s32.totalorder %s262, %s264
      %p271 = scmp.eq.s32.totalorder %s34, 1
      %p272 = por %p270, %p271
      %p273 = scmp.ne.s32.totalorder %s264, %s265
      %p274 = scmp.eq.s32.totalorder %s34, 0
      %p275 = por %p273, %p274
      %p276 = scmp.ne.s32.totalorder %s264, %s265
      %p277 = scmp.eq.s32.totalorder %s35, 1
      %p278 = por %p276, %p277
      %p280 = scmp.ne.s32.totalorder %s265, %s279
      %p281 = scmp.eq.s32.totalorder %s35, 0
      %p282 = por %p280, %p281
      %s284 = sadd.s32 %s283, 1
      %p287 = scmp.eq.s32.totalorder %s29, 1
      %p288 = scmp.ne.s32.totalorder %s283, %s285
      %p289 = scmp.eq.s32.totalorder %s29, 0
      %p290 = por %p288, %p289
      %p291 = scmp.ne.s32.totalorder %s283, %s285
      %p292 = scmp.eq.s32.totalorder %s34, 1
      %p293 = por %p291, %p292
      %p294 = scmp.ne.s32.totalorder %s285, %s286
      %p295 = scmp.eq.s32.totalorder %s34, 0
      %p296 = por %p294, %p295
      %p297 = scmp.ne.s32.totalorder %s285, %s286
      %p298 = scmp.eq.s32.totalorder %s35, 1
      %p299 = por %p297, %p298
      %p301 = scmp.ne.s32.totalorder %s286, %s300
      %p302 = scmp.eq.s32.totalorder %s35, 0
      %p303 = por %p301, %p302
      %s305 = sadd.s32 %s304, 1
      %p308 = scmp.eq.s32.totalorder %s29, 1
      %p309 = scmp.ne.s32.totalorder %s304, %s306
      %p310 = scmp.eq.s32.totalorder %s29, 0
      %p311 = por %p309, %p310
      %p312 = scmp.ne.s32.totalorder %s304, %s306
      %p313 = scmp.eq.s32.totalorder %s34, 1
      %p314 = por %p312, %p313
      %p315 = scmp.ne.s32.totalorder %s306, %s307
      %p316 = scmp.eq.s32.totalorder %s34, 0
      %p317 = por %p315, %p316
      %p318 = scmp.ne.s32.totalorder %s306, %s307
      %p319 = scmp.eq.s32.totalorder %s35, 1
      %p320 = por %p318, %p319
      %p322 = scmp.ne.s32.totalorder %s307, %s321
      %p323 = scmp.eq.s32.totalorder %s35, 0
      %p324 = por %p322, %p323
      %s326 = sadd.s32 %s325, 1
      %p329 = scmp.eq.s32.totalorder %s29, 1
      %p330 = scmp.ne.s32.totalorder %s325, %s327
      %p331 = scmp.eq.s32.totalorder %s29, 0
      %p332 = por %p330, %p331
      %p333 = scmp.ne.s32.totalorder %s325, %s327
      %p334 = scmp.eq.s32.totalorder %s34, 1
      %p335 = por %p333, %p334
      %p336 = scmp.ne.s32.totalorder %s327, %s328
      %p337 = scmp.eq.s32.totalorder %s34, 0
      %p338 = por %p336, %p337
      %p339 = scmp.ne.s32.totalorder %s327, %s328
      %p340 = scmp.eq.s32.totalorder %s35, 1
      %p341 = por %p339, %p340
      %p343 = scmp.ne.s32.totalorder %s328, %s342
      %p344 = scmp.eq.s32.totalorder %s35, 0
      %p345 = por %p343, %p344
      %s346 = ssub.s32 %s29, %s36
      %p347 = scmp.eq.s32.totalorder %s346, 0
      %s349 = sadd.s32 %s348, 1
      %s350 = scalar_select %p347, %s348, %s349
      %p353 = pneg %p347
      %p354 = scmp.eq.s32.totalorder %s29, 1
      %p355 = por %p353, %p354
      %p356 = scmp.ne.s32.totalorder %s348, %s351
      %p357 = scmp.eq.s32.totalorder %s29, 0
      %p358 = por %p356, %p357
      %p359 = scmp.ne.s32.totalorder %s348, %s351
      %p360 = scmp.eq.s32.totalorder %s34, 1
      %p361 = por %p359, %p360
      %p362 = scmp.ne.s32.totalorder %s351, %s352
      %p363 = scmp.eq.s32.totalorder %s34, 0
      %p364 = por %p362, %p363
      %p365 = scmp.ne.s32.totalorder %s351, %s352
      %p366 = scmp.eq.s32.totalorder %s35, 1
      %p367 = por %p365, %p366
      %p369 = scmp.ne.s32.totalorder %s352, %s368
      %p370 = scmp.eq.s32.totalorder %s35, 0
      %p371 = por %p369, %p370
      %p372 = scmp.le.s32.totalorder 1, %s29
      %p373 = scmp.lt.s32.totalorder %s29, 3
      %p374 = pnand %p372, %p373
      %p375 = pneg %p374
      // Predicated region
      $region9: #{tpu_custom_call.1} parent=5 // pred_check
        _
      $region10: #{tpu_custom_call.1} parent=5 // pred_check_branch
        %377 = sbr.rel (%p374) target = $region12
      $region11: #{tpu_custom_call.1} parent=5 // pred_region
        %s378 = ssub.s32 %s29, 1
        // Predicated region
        $region13: #{tpu_custom_call.1} parent=11 // pred_check
          %p379 = pneg %p128
        $region14: #{tpu_custom_call.1} parent=11 // pred_check_branch
          %381 = sbr.rel (%p379) target = $region16
        $region15: #{tpu_custom_call.1} parent=11 // pred_region
          %383 = vsyncadd [#allocation6], 0
          %s384 = sshll.u32 %s3, 4
          %s385 = int_to_ptr.hbm [resolvable:$true] %s384
          %s386 = sshll.u32 [#allocation5], 4
          %s387 = int_to_ptr.vmem [resolvable:$true] %s386
          %392 = dma.hbm_to_vmem [thread:$0]  %s385, 1024, %s387, [#allocation6], 64, 64, 4
        $region16: #{tpu_custom_call.1} parent=11 // pred_fallthru
          _
        // Predicated region
        $region17: #{tpu_custom_call.1} parent=11 // pred_check
          %p393 = pneg %p149
        $region18: #{tpu_custom_call.1} parent=11 // pred_check_branch
          %395 = sbr.rel (%p393) target = $region20
        $region19: #{tpu_custom_call.1} parent=11 // pred_region
          %397 = vsyncadd [#allocation6], 0
          %s399 = sshll.u32 %s4, 4
          %s400 = int_to_ptr.hbm [resolvable:$true] %s399
          %s401 = sshll.u32 [#allocation7], 4
          %s402 = int_to_ptr.vmem [resolvable:$true] %s401
          %404 = dma.hbm_to_vmem [thread:$0]  %s400, 16, %s402, [#allocation6]
        $region20: #{tpu_custom_call.1} parent=11 // pred_fallthru
          _
        // Predicated region
        $region21: #{tpu_custom_call.1} parent=11 // pred_check
          %p405 = pneg %p170
        $region22: #{tpu_custom_call.1} parent=11 // pred_check_branch
          %407 = sbr.rel (%p405) target = $region24
        $region23: #{tpu_custom_call.1} parent=11 // pred_region
          %409 = vsyncadd [#allocation9], 0
          %s410 = sshll.u32 %s5, 4
          %s411 = int_to_ptr.hbm [resolvable:$true] %s410
          %s412 = sshll.u32 [#allocation8], 4
          %s413 = int_to_ptr.vmem [resolvable:$true] %s412
          %418 = dma.hbm_to_vmem [thread:$0]  %s411, 1024, %s413, [#allocation9], 64, 64, 4
        $region24: #{tpu_custom_call.1} parent=11 // pred_fallthru
          _
        // Predicated region
        $region25: #{tpu_custom_call.1} parent=11 // pred_check
          %p419 = pneg %p191
        $region26: #{tpu_custom_call.1} parent=11 // pred_check_branch
          %421 = sbr.rel (%p419) target = $region28
        $region27: #{tpu_custom_call.1} parent=11 // pred_region
          _
        $region28: #{tpu_custom_call.1} parent=11 // pred_fallthru
          _
        // Predicated region
        $region29: #{tpu_custom_call.1} parent=11 // pred_check
          %p422 = pneg %p212
        $region30: #{tpu_custom_call.1} parent=11 // pred_check_branch
          %424 = sbr.rel (%p422) target = $region32
        $region31: #{tpu_custom_call.1} parent=11 // pred_region
          _
        $region32: #{tpu_custom_call.1} parent=11 // pred_fallthru
          _
        // Predicated region
        $region33: #{tpu_custom_call.1} parent=11 // pred_check
          %p425 = pneg %p233
        $region34: #{tpu_custom_call.1} parent=11 // pred_check_branch
          %427 = sbr.rel (%p425) target = $region36
        $region35: #{tpu_custom_call.1} parent=11 // pred_region
          _
        $region36: #{tpu_custom_call.1} parent=11 // pred_fallthru
          _
        // Predicated region
        $region37: #{tpu_custom_call.1} parent=11 // pred_check
          %p428 = pneg %p254
        $region38: #{tpu_custom_call.1} parent=11 // pred_check_branch
          %430 = sbr.rel (%p428) target = $region40
        $region39: #{tpu_custom_call.1} parent=11 // pred_region
          %432 = vsyncadd [#allocation9], 0
          %s433 = sshll.u32 %s9, 4
          %s434 = int_to_ptr.hbm [resolvable:$true] %s433
          %s435 = sshll.u32 [#allocation10], 4
          %s436 = int_to_ptr.vmem [resolvable:$true] %s435
          %441 = dma.hbm_to_vmem [thread:$0]  %s434, 2048, %s436, [#allocation9], 64, 64, 4
        $region40: #{tpu_custom_call.1} parent=11 // pred_fallthru
          _
        // Predicated region
        $region41: #{tpu_custom_call.1} parent=11 // pred_check
          %p442 = pneg %p275
        $region42: #{tpu_custom_call.1} parent=11 // pred_check_branch
          %444 = sbr.rel (%p442) target = $region44
        $region43: #{tpu_custom_call.1} parent=11 // pred_region
          %446 = vsyncadd [#allocation12], 0
          %s447 = sshll.u32 %s10, 4
          %s448 = int_to_ptr.hbm [resolvable:$true] %s447
          %s449 = sshll.u32 [#allocation11], 4
          %s450 = int_to_ptr.vmem [resolvable:$true] %s449
          %455 = dma.hbm_to_vmem [thread:$0]  %s448, 1024, %s450, [#allocation12], 64, 64, 4
        $region44: #{tpu_custom_call.1} parent=11 // pred_fallthru
          _
        // Predicated region
        $region45: #{tpu_custom_call.1} parent=11 // pred_check
          %p456 = pneg %p296
        $region46: #{tpu_custom_call.1} parent=11 // pred_check_branch
          %458 = sbr.rel (%p456) target = $region48
        $region47: #{tpu_custom_call.1} parent=11 // pred_region
          _
        $region48: #{tpu_custom_call.1} parent=11 // pred_fallthru
          _
        // Predicated region
        $region49: #{tpu_custom_call.1} parent=11 // pred_check
          %p459 = pneg %p317
        $region50: #{tpu_custom_call.1} parent=11 // pred_check_branch
          %461 = sbr.rel (%p459) target = $region52
        $region51: #{tpu_custom_call.1} parent=11 // pred_region
          %463 = vsyncadd [#allocation12], 0
          %s464 = sshll.u32 %s12, 4
          %s465 = int_to_ptr.hbm [resolvable:$true] %s464
          %s466 = sshll.u32 [#allocation13], 4
          %s467 = int_to_ptr.vmem [resolvable:$true] %s466
          %472 = dma.hbm_to_vmem [thread:$0]  %s465, 1024, %s467, [#allocation12], 64, 64, 4
        $region52: #{tpu_custom_call.1} parent=11 // pred_fallthru
          _
        // Predicated region
        $region53: #{tpu_custom_call.1} parent=11 // pred_check
          %p473 = pneg %p338
        $region54: #{tpu_custom_call.1} parent=11 // pred_check_branch
          %475 = sbr.rel (%p473) target = $region56
        $region55: #{tpu_custom_call.1} parent=11 // pred_region
          _
        $region56: #{tpu_custom_call.1} parent=11 // pred_fallthru
          _
      $region12: #{tpu_custom_call.1} parent=5 // pred_fallthru
        _
      %p476 = scmp.lt.s32.totalorder %s29, 2
      // Predicated region
      $region57: #{tpu_custom_call.1} parent=5 // pred_check
        %p477 = pneg %p476
      $region58: #{tpu_custom_call.1} parent=5 // pred_check_branch
        %479 = sbr.rel (%p477) target = $region60
      $region59: #{tpu_custom_call.1} parent=5 // pred_region
        // Predicated region
        $region61: #{tpu_custom_call.1} parent=59 // pred_check
          %p480 = pneg %p49
        $region62: #{tpu_custom_call.1} parent=59 // pred_check_branch
          %482 = sbr.rel (%p480) target = $region64
        $region63: #{tpu_custom_call.1} parent=59 // pred_region
          %s483 = sand.u32 %s39, 1
          %s484 = scalar_lea.sflag [#allocation3], %s483
          %s485 = sand.u32 %s39, 1
          %s486 = smul.addr %s485, 8
          %s487 = scalar_lea.vmem [#allocation2], %s486
          %489 = vsyncadd %s484, 0
          %s490 = smul.addr %s29, 2
          %s491 = smul.addr %s490, 4
          %s492 = scalar_lea.hbm %s0, %s491
          %s493 = sshll.u32 %s492, 4
          %s494 = int_to_ptr.hbm [resolvable:$true] %s493
          %s495 = sshll.u32 %s487, 4
          %s496 = int_to_ptr.vmem [resolvable:$true] %s495
          %501 = dma.hbm_to_vmem [thread:$0]  %s494, 128, %s496, %s484, 64, 64, 4
        $region64: #{tpu_custom_call.1} parent=59 // pred_fallthru
          _
        // Predicated region
        $region65: #{tpu_custom_call.1} parent=59 // pred_check
          %p502 = pneg %p75
        $region66: #{tpu_custom_call.1} parent=59 // pred_check_branch
          %504 = sbr.rel (%p502) target = $region68
        $region67: #{tpu_custom_call.1} parent=59 // pred_region
          %p505 = scmp.lt.s32.totalorder %s29, 1
          %s506 = scalar_select %p505, %s29, 1
          %s507 = smul.addr %s506, 2
          %s508 = smul.addr %s507, 8
          %s509 = scalar_lea.vmem %s1, %s508
        $region68: #{tpu_custom_call.1} parent=59 // pred_fallthru
          _
        // Predicated region
        $region69: #{tpu_custom_call.1} parent=59 // pred_check
          %p510 = pneg %p101
        $region70: #{tpu_custom_call.1} parent=59 // pred_check_branch
          %512 = sbr.rel (%p510) target = $region72
        $region71: #{tpu_custom_call.1} parent=59 // pred_region
          %p513 = scmp.lt.s32.totalorder %s29, 1
          %s514 = scalar_select %p513, %s29, 1
          %s515 = smul.addr %s514, 4
          %s516 = scalar_lea.vmem %s2, %s515
        $region72: #{tpu_custom_call.1} parent=59 // pred_fallthru
          _
      $region60: #{tpu_custom_call.1} parent=5 // pred_fallthru
        _
      %p517 = scmp.le.s32.totalorder 1, %s29
      %p518 = scmp.lt.s32.totalorder %s29, 3
      %p519 = pnand %p517, %p518
      %p520 = pneg %p519
      // Predicated region
      $region73: #{tpu_custom_call.1} parent=5 // pred_check
        _
      $region74: #{tpu_custom_call.1} parent=5 // pred_check_branch
        %522 = sbr.rel (%p519) target = $region76
      $region75: #{tpu_custom_call.1} parent=5 // pred_region
        %s523 = ssub.s32 %s29, 1
        %s524 = sand.u32 %s42, 1
        %s525 = scalar_lea.sflag [#allocation3], %s524
        %s526 = sand.u32 %s42, 1
        %s527 = smul.addr %s526, 8
        %s528 = scalar_lea.vmem [#allocation2], %s527
        // Predicated region
        $region77: #{tpu_custom_call.1} parent=75 // pred_check
          %p529 = pneg %p55
        $region78: #{tpu_custom_call.1} parent=75 // pred_check_branch
          %531 = sbr.rel (%p529) target = $region80
        $region79: #{tpu_custom_call.1} parent=75 // pred_region
          %533 = dma.done %s525, 128
        $region80: #{tpu_custom_call.1} parent=75 // pred_fallthru
          _
        // Predicated region
        $region81: #{tpu_custom_call.1} parent=75 // pred_check
          %p534 = pneg %p128
        $region82: #{tpu_custom_call.1} parent=75 // pred_check_branch
          %536 = sbr.rel (%p534) target = $region84
        $region83: #{tpu_custom_call.1} parent=75 // pred_region
          %538 = dma.done [#allocation6], 1024
        $region84: #{tpu_custom_call.1} parent=75 // pred_fallthru
          _
        // Predicated region
        $region85: #{tpu_custom_call.1} parent=75 // pred_check
          %p539 = pneg %p149
        $region86: #{tpu_custom_call.1} parent=75 // pred_check_branch
          %541 = sbr.rel (%p539) target = $region88
        $region87: #{tpu_custom_call.1} parent=75 // pred_region
          %543 = dma.done [#allocation6], 16
        $region88: #{tpu_custom_call.1} parent=75 // pred_fallthru
          _
        // Predicated region
        $region89: #{tpu_custom_call.1} parent=75 // pred_check
          %p544 = pneg %p170
        $region90: #{tpu_custom_call.1} parent=75 // pred_check_branch
          %546 = sbr.rel (%p544) target = $region92
        $region91: #{tpu_custom_call.1} parent=75 // pred_region
          %548 = dma.done [#allocation9], 1024
        $region92: #{tpu_custom_call.1} parent=75 // pred_fallthru
          _
        // Predicated region
        $region93: #{tpu_custom_call.1} parent=75 // pred_check
          %p549 = pneg %p254
        $region94: #{tpu_custom_call.1} parent=75 // pred_check_branch
          %551 = sbr.rel (%p549) target = $region96
        $region95: #{tpu_custom_call.1} parent=75 // pred_region
          %553 = dma.done [#allocation9], 2048
        $region96: #{tpu_custom_call.1} parent=75 // pred_fallthru
          _
        // Predicated region
        $region97: #{tpu_custom_call.1} parent=75 // pred_check
          %p554 = pneg %p275
        $region98: #{tpu_custom_call.1} parent=75 // pred_check_branch
          %556 = sbr.rel (%p554) target = $region100
        $region99: #{tpu_custom_call.1} parent=75 // pred_region
          %558 = dma.done [#allocation12], 1024
        $region100: #{tpu_custom_call.1} parent=75 // pred_fallthru
          _
        // Predicated region
        $region101: #{tpu_custom_call.1} parent=75 // pred_check
          %p559 = pneg %p317
        $region102: #{tpu_custom_call.1} parent=75 // pred_check_branch
          %561 = sbr.rel (%p559) target = $region104
        $region103: #{tpu_custom_call.1} parent=75 // pred_region
          %563 = dma.done [#allocation12], 1024
        $region104: #{tpu_custom_call.1} parent=75 // pred_fallthru
          _
        %s564 = sand.u32 %s42, 1
        %s565 = scalar_lea.sflag [#allocation3], %s564
        %s566 = sand.u32 %s42, 1
        %s567 = smul.addr %s566, 8
        %s568 = scalar_lea.vmem [#allocation2], %s567
        %p569 = pneg %p55
        %p570 = pneg %p52
        %p571 = scmp.lt.s32.totalorder %s34, 1
        %s572 = scalar_select %p571, %s34, 1
        %s573 = smul.addr %s572, 2
        %s574 = smul.addr %s573, 8
        %s575 = scalar_lea.vmem %s1, %s574
        %p576 = pneg %p81
        %p577 = pneg %p78
        %p578 = scmp.lt.s32.totalorder %s34, 1
        %s579 = scalar_select %p578, %s34, 1
        %s580 = smul.addr %s579, 4
        %s581 = scalar_lea.vmem %s2, %s580
        %p582 = pneg %p107
        %p583 = pneg %p104
        %p584 = pneg %p128
        %p585 = pneg %p125
        %p586 = pneg %p149
        %p587 = pneg %p146
        %p588 = pneg %p170
        %p589 = pneg %p167
        %p590 = pneg %p191
        %p591 = pneg %p188
        %p592 = pneg %p212
        %p593 = pneg %p209
        %p594 = pneg %p233
        %p595 = pneg %p230
        %p596 = pneg %p254
        %p597 = pneg %p251
        %p598 = pneg %p275
        %p599 = pneg %p272
        %p600 = pneg %p296
        %p601 = pneg %p293
        %p602 = pneg %p317
        %p603 = pneg %p314
        %p604 = pneg %p338
        %p605 = pneg %p335
        %p606 = pneg %p364
        %p607 = pneg %p361
        %s608 = sand.u32 %s351, 1
        %s609 = scalar_lea.sflag [#allocation4], %s608
        %s610 = sand.u32 %s351, 1
        %s611 = scalar_lea.vmem [#allocation14], %s610
        %p612 = scmp.lt.s32.totalorder %s34, 1
        %s613 = scalar_select %p612, %s34, 1
        %s614 = smul.addr %s613, 2
        %s615 = smul.addr %s614, 8
        %s616 = scalar_lea.vmem %s1, %s615
        %p617 = scmp.lt.s32.totalorder %s34, 1
        %s618 = scalar_select %p617, %s34, 1
        %s619 = smul.addr %s618, 4
        %s620 = scalar_lea.vmem %s2, %s619
        %v622 = vld [vmem:[%s528] sm:$0xf]
        %v623 = vld [vmem:[%s528 + $0x4] sm:$0xf]
        %v624 = vld [vmem:[%s616] sm:$0xff]
        %v625 = vld [vmem:[%s616 + $0x8] sm:$0xff]
        %v626 = vld [vmem:[%s620] sm:$0xf]
        %v627 = vld [vmem:[#allocation5] sm:$0xf]
        %v628 = vld [vmem:[#allocation5 + $0x4] sm:$0xf]
        %v629 = vld [vmem:[#allocation5 + $0x8] sm:$0xf]
        %v630 = vld [vmem:[#allocation5 + $0xc] sm:$0xf]
        %v631 = vld [vmem:[#allocation5 + $0x10] sm:$0xf]
        %v632 = vld [vmem:[#allocation5 + $0x14] sm:$0xf]
        %v633 = vld [vmem:[#allocation5 + $0x18] sm:$0xf]
        %v634 = vld [vmem:[#allocation5 + $0x1c] sm:$0xf]
        %v635 = vld [vmem:[#allocation5 + $0x20] sm:$0xf]
        %v636 = vld [vmem:[#allocation5 + $0x24] sm:$0xf]
        %v637 = vld [vmem:[#allocation5 + $0x28] sm:$0xf]
        %v638 = vld [vmem:[#allocation5 + $0x2c] sm:$0xf]
        %v639 = vld [vmem:[#allocation5 + $0x30] sm:$0xf]
        %v640 = vld [vmem:[#allocation5 + $0x34] sm:$0xf]
        %v641 = vld [vmem:[#allocation5 + $0x38] sm:$0xf]
        %v642 = vld [vmem:[#allocation5 + $0x3c] sm:$0xf]
        %v643 = vld [vmem:[#allocation7] sm:$0x1]
        %v645 = vperm.slane %v643, 0
        %v649 = vunpack.c.l.b16 %v622
        %v650 = vunpack.c.l.b16 %v623
        %v651 = vpack.c.b16 %v650, %v649
        %v669 = vunpack.c.l.b16 %v627
        %v670 = vunpack.c.l.b16 %v628
        %v671 = vunpack.c.l.b16 %v629
        %v672 = vunpack.c.l.b16 %v630
        %v673 = vunpack.c.l.b16 %v631
        %v674 = vunpack.c.l.b16 %v632
        %v675 = vunpack.c.l.b16 %v633
        %v676 = vunpack.c.l.b16 %v634
        %v677 = vunpack.c.l.b16 %v635
        %v678 = vunpack.c.l.b16 %v636
        %v679 = vunpack.c.l.b16 %v637
        %v680 = vunpack.c.l.b16 %v638
        %v681 = vunpack.c.l.b16 %v639
        %v682 = vunpack.c.l.b16 %v640
        %v683 = vunpack.c.l.b16 %v641
        %v684 = vunpack.c.l.b16 %v642
        %v685 = vpack.c.b16 %v670, %v669
        %v686 = vpack.c.b16 %v672, %v671
        %v687 = vpack.c.b16 %v674, %v673
        %v688 = vpack.c.b16 %v676, %v675
        %v689 = vpack.c.b16 %v678, %v677
        %v690 = vpack.c.b16 %v680, %v679
        %v691 = vpack.c.b16 %v682, %v681
        %v692 = vpack.c.b16 %v684, %v683
        %701 = vmatpush.bf16.msra.mxu0 %v692
        %702 = vmatpush.bf16.msra.mxu0 %v691
        %703 = vmatpush.bf16.msra.mxu0 %v690
        %704 = vmatpush.bf16.msra.mxu0 %v689
        %705 = vmatpush.bf16.msra.mxu0 %v688
        %706 = vmatpush.bf16.msra.mxu0 %v687
        %707 = vmatpush.bf16.msra.mxu0 %v686
        %708 = vmatpush.bf16.msra.mxu0 %v685
        %709 = vmatmul.bf16.gmra.mxu0 %v651
        %v710 = vpop.f32.mrf.mxu0
        %v711 = vadd.f32 %v645, %v710
        %v712 = vpop.f32.mrf.mxu0
        %v713 = vadd.f32 %v645, %v712
        %714 = vdwg.mxu0
        %v715 = vmax.f32 %v711, 0.0
        %v716 = vmax.f32 %v713, 0.0
        %v717 = vld [vmem:[%s6] sm:$0xf]
        %719 = vset.pattern.permute.xlu0 0
        %720 = vperm.xlu0 %719, %v624
        %v721 = vpop.permute.xlu0 %720
        %724 = vset.pattern.permute.xlu0 0
        %725 = vperm.xlu0 %724, %v625
        %v726 = vpop.permute.xlu0 %725
        %v728 = vperm.slane %v717, 0
        %v729 = vmul.f32 %v721, %v728
        %v730 = vmul.f32 %v726, %v728
        %731 = vset.pattern.permute.xlu0 1
        %732 = vperm.xlu0 %731, %v624
        %v733 = vpop.permute.xlu0 %732
        %735 = vset.pattern.permute.xlu0 1
        %736 = vperm.xlu0 %735, %v625
        %v737 = vpop.permute.xlu0 %736
        %v739 = vperm.slane %v717, 1
        %v740 = vmul.f32 %v733, %v739
        %v741 = vmul.f32 %v737, %v739
        %v742 = vadd.f32 %v729, %v740
        %v743 = vadd.f32 %v730, %v741
        %744 = vset.pattern.permute.xlu0 2
        %745 = vperm.xlu0 %744, %v624
        %v746 = vpop.permute.xlu0 %745
        %748 = vset.pattern.permute.xlu0 2
        %749 = vperm.xlu0 %748, %v625
        %v750 = vpop.permute.xlu0 %749
        %v752 = vperm.slane %v717, 2
        %v753 = vmul.f32 %v746, %v752
        %v754 = vmul.f32 %v750, %v752
        %v755 = vadd.f32 %v742, %v753
        %v756 = vadd.f32 %v743, %v754
        %757 = vset.pattern.permute.xlu0 3
        %758 = vperm.xlu0 %757, %v624
        %v759 = vpop.permute.xlu0 %758
        %761 = vset.pattern.permute.xlu0 3
        %762 = vperm.xlu0 %761, %v625
        %v763 = vpop.permute.xlu0 %762
        %v765 = vperm.slane %v717, 3
        %v766 = vmul.f32 %v759, %v765
        %v767 = vmul.f32 %v763, %v765
        %v768 = vadd.f32 %v755, %v766
        %v769 = vadd.f32 %v756, %v767
        %v770 = vpack.c.bf16 %v716, %v715
        %v771 = vld [vmem:[#allocation8] sm:$0xf]
        %v772 = vld [vmem:[#allocation8 + $0x4] sm:$0xf]
        %v773 = vld [vmem:[#allocation8 + $0x8] sm:$0xf]
        %v774 = vld [vmem:[#allocation8 + $0xc] sm:$0xf]
        %v775 = vld [vmem:[#allocation8 + $0x10] sm:$0xf]
        %v776 = vld [vmem:[#allocation8 + $0x14] sm:$0xf]
        %v777 = vld [vmem:[#allocation8 + $0x18] sm:$0xf]
        %v778 = vld [vmem:[#allocation8 + $0x1c] sm:$0xf]
        %v779 = vld [vmem:[#allocation8 + $0x20] sm:$0xf]
        %v780 = vld [vmem:[#allocation8 + $0x24] sm:$0xf]
        %v781 = vld [vmem:[#allocation8 + $0x28] sm:$0xf]
        %v782 = vld [vmem:[#allocation8 + $0x2c] sm:$0xf]
        %v783 = vld [vmem:[#allocation8 + $0x30] sm:$0xf]
        %v784 = vld [vmem:[#allocation8 + $0x34] sm:$0xf]
        %v785 = vld [vmem:[#allocation8 + $0x38] sm:$0xf]
        %v786 = vld [vmem:[#allocation8 + $0x3c] sm:$0xf]
        %v803 = vunpack.c.l.b16 %v771
        %v804 = vunpack.c.l.b16 %v772
        %v805 = vunpack.c.l.b16 %v773
        %v806 = vunpack.c.l.b16 %v774
        %v807 = vunpack.c.l.b16 %v775
        %v808 = vunpack.c.l.b16 %v776
        %v809 = vunpack.c.l.b16 %v777
        %v810 = vunpack.c.l.b16 %v778
        %v811 = vunpack.c.l.b16 %v779
        %v812 = vunpack.c.l.b16 %v780
        %v813 = vunpack.c.l.b16 %v781
        %v814 = vunpack.c.l.b16 %v782
        %v815 = vunpack.c.l.b16 %v783
        %v816 = vunpack.c.l.b16 %v784
        %v817 = vunpack.c.l.b16 %v785
        %v818 = vunpack.c.l.b16 %v786
        %v819 = vpack.c.b16 %v804, %v803
        %v820 = vpack.c.b16 %v806, %v805
        %v821 = vpack.c.b16 %v808, %v807
        %v822 = vpack.c.b16 %v810, %v809
        %v823 = vpack.c.b16 %v812, %v811
        %v824 = vpack.c.b16 %v814, %v813
        %v825 = vpack.c.b16 %v816, %v815
        %v826 = vpack.c.b16 %v818, %v817
        %835 = vmatpush.bf16.msra.mxu0 %v826
        %836 = vmatpush.bf16.msra.mxu0 %v825
        %837 = vmatpush.bf16.msra.mxu0 %v824
        %838 = vmatpush.bf16.msra.mxu0 %v823
        %839 = vmatpush.bf16.msra.mxu0 %v822
        %840 = vmatpush.bf16.msra.mxu0 %v821
        %841 = vmatpush.bf16.msra.mxu0 %v820
        %842 = vmatpush.bf16.msra.mxu0 %v819
        %843 = vmatmul.bf16.gmra.mxu0 %v770
        %v844 = vpop.f32.mrf.mxu0
        %v845 = vadd.f32 %v768, %v844
        %v846 = vpop.f32.mrf.mxu0
        %v847 = vadd.f32 %v769, %v846
        %848 = vdwg.mxu0
        %v849 = vmax.f32 %v845, 0.0
        %v850 = vmax.f32 %v847, 0.0
        %v851 = vld [vmem:[%s7] sm:$0xf]
        %v852 = vld [vmem:[%s7 + $0x4] sm:$0xf]
        %v853 = vld [vmem:[%s7 + $0x8] sm:$0xf]
        %v854 = vld [vmem:[%s7 + $0xc] sm:$0xf]
        %v855 = vld [vmem:[%s7 + $0x10] sm:$0xf]
        %v856 = vld [vmem:[%s7 + $0x14] sm:$0xf]
        %v857 = vld [vmem:[%s7 + $0x18] sm:$0xf]
        %v858 = vld [vmem:[%s7 + $0x1c] sm:$0xf]
        %v867 = vunpack.c.l.b16 %v851
        %v868 = vunpack.c.l.b16 %v852
        %v869 = vunpack.c.l.b16 %v853
        %v870 = vunpack.c.l.b16 %v854
        %v871 = vunpack.c.l.b16 %v855
        %v872 = vunpack.c.l.b16 %v856
        %v873 = vunpack.c.l.b16 %v857
        %v874 = vunpack.c.l.b16 %v858
        %v875 = vpack.c.b16 %v868, %v867
        %v876 = vpack.c.b16 %v870, %v869
        %v877 = vpack.c.b16 %v872, %v871
        %v878 = vpack.c.b16 %v874, %v873
        %vm883 = vcmask 523264
        %v885 = vsel %vm883, %v626, 0
        %887 = vmatpush.bf16.msra.mxu0 0
        %888 = vmatpush.bf16.msra.mxu0 0
        %889 = vmatpush.bf16.msra.mxu0 0
        %890 = vmatpush.bf16.msra.mxu0 0
        %891 = vmatpush.bf16.msra.mxu0 %v878
        %892 = vmatpush.bf16.msra.mxu0 %v877
        %893 = vmatpush.bf16.msra.mxu0 %v876
        %894 = vmatpush.bf16.msra.mxu0 %v875
        %895 = vmatmul.bf16.gmra.mxu0 %v885
        %v896 = vpop.f32.mrf.mxu0
        %v897 = vadd.f32 0.0, %v896
        %v898 = vpop.f32.mrf.mxu0
        %899 = vdwg.mxu0
        %v900 = vmax.f32 %v897, 0.0
        %v901 = vpack.c.bf16 %v900, %v900
        %v902 = vrot.slane %v900, 4
        %v903 = vadd.f32 %v900, %v902
        %v904 = vrot.slane %v903, 2
        %v905 = vadd.f32 %v903, %v904
        %v906 = vrot.slane %v905, 1
        %v907 = vadd.f32 %v905, %v906
        %v908 = vrcp.pop 8.0
        %v909 = vmul.f32 8.0, %v908
        %v910 = vsub.f32 1.0, %v909
        %v911 = vmul.f32 %v908, %v910
        %v912 = vadd.f32 %v908, %v911
        %vm913 = vweird.f32 %v908
        %v914 = vsel %vm913, %v908, %v912
        %v915 = vmul.f32 %v907, %v914
        %v916 = vld [vmem:[%s8] sm:$0x3]
        %v918 = vrot.slane %v916, 1
        %v919 = vperm.slane %v916, 0
        %v920 = vperm.slane %v918, 0
        %v923 = vmul.f32 %v849, %v919
        %v924 = vmul.f32 %v850, %v919
        %v925 = vmul.f32 %v849, %v920
        %v926 = vmul.f32 %v850, %v920
        %v927 = vpack.c.bf16 %v923, %v923
        %v928 = vpack.c.bf16 %v924, %v924
        %v929 = vpack.c.bf16 %v925, %v925
        %v930 = vpack.c.bf16 %v926, %v926
        %v935 = vunpack.c.l.b16 %v927
        %v936 = vunpack.c.l.b16 %v928
        %v937 = vunpack.c.l.b16 %v929
        %v938 = vunpack.c.l.b16 %v930
        %v939 = vpack.c.b16 %v936, %v935
        %v940 = vpack.c.b16 %v938, %v937
        %943 = vmatpush.bf16.xpose.msra.mxu0 0
        %944 = vmatpush.bf16.xpose.msra.mxu0 0
        %945 = vmatpush.bf16.xpose.msra.mxu0 0
        %946 = vmatpush.bf16.xpose.msra.mxu0 0
        %947 = vmatpush.bf16.xpose.msra.mxu0 0
        %948 = vmatpush.bf16.xpose.msra.mxu0 0
        %949 = vmatpush.bf16.xpose.msra.mxu0 0
        %950 = vmatpush.bf16.xpose.msra.mxu0 %v901
        %951 = vmatmul.bf16.gmra.mxu0 %v939
        %v952 = vpop.f32.mrf.mxu0
        %v953 = vadd.f32 0.0, %v952
        %v954 = vpop.f32.mrf.mxu0
        %v955 = vadd.f32 0.0, %v954
        %956 = vmatmul.bf16.gmra.mxu0 %v940
        %v957 = vpop.f32.mrf.mxu0
        %v958 = vadd.f32 0.0, %v957
        %v959 = vpop.f32.mrf.mxu0
        %v960 = vadd.f32 0.0, %v959
        %961 = vdwg.mxu0
        %vm962 = vcmask 64512
        %v963 = vsel %vm962, %v953, -inf
        %964 = vmax.xlane.f32.xlu0 %v963
        %v965 = vpop.xlane.xlu0 %964
        %v966 = vsel %vm962, %v955, -inf
        %967 = vmax.xlane.f32.xlu0 %v966
        %v968 = vpop.xlane.xlu0 %967
        %v969 = vsel %vm962, %v958, -inf
        %970 = vmax.xlane.f32.xlu0 %v969
        %v971 = vpop.xlane.xlu0 %970
        %v972 = vsel %vm962, %v960, -inf
        %973 = vmax.xlane.f32.xlu0 %v972
        %v974 = vpop.xlane.xlu0 %973
        %v975 = vmax.f32 %v965, %v968
        %v976 = vrot.slane %v975, 4
        %v977 = vmax.f32 %v975, %v976
        %v978 = vrot.slane %v977, 2
        %v979 = vmax.f32 %v977, %v978
        %v980 = vrot.slane %v979, 1
        %v981 = vmax.f32 %v979, %v980
        %v982 = vmax.f32 %v971, %v974
        %v983 = vrot.slane %v982, 4
        %v984 = vmax.f32 %v982, %v983
        %v985 = vrot.slane %v984, 2
        %v986 = vmax.f32 %v984, %v985
        %v987 = vrot.slane %v986, 1
        %v988 = vmax.f32 %v986, %v987
        %v989 = vsub.f32 %v953, %v981
        %v990 = vsub.f32 %v955, %v981
        %v991 = vsub.f32 %v958, %v988
        %v992 = vsub.f32 %v960, %v988
        %v993 = vmul.f32 %v989, 1.442695
        %v994 = vpow.pop %v993
        %v995 = vmul.f32 %v990, 1.442695
        %v996 = vpow.pop %v995
        %v997 = vmul.f32 %v991, 1.442695
        %v998 = vpow.pop %v997
        %v999 = vmul.f32 %v992, 1.442695
        %v1000 = vpow.pop %v999
        %v1001 = vsel %vm962, %v994, 0.0
        %1002 = vadd.xlane.f32.xlu0 %v1001
        %v1003 = vpop.xlane.xlu0 %1002
        %v1004 = vsel %vm962, %v996, 0.0
        %1005 = vadd.xlane.f32.xlu0 %v1004
        %v1006 = vpop.xlane.xlu0 %1005
        %v1007 = vsel %vm962, %v998, 0.0
        %1008 = vadd.xlane.f32.xlu0 %v1007
        %v1009 = vpop.xlane.xlu0 %1008
        %v1010 = vsel %vm962, %v1000, 0.0
        %1011 = vadd.xlane.f32.xlu0 %v1010
        %v1012 = vpop.xlane.xlu0 %1011
        %v1013 = vadd.f32 %v1003, %v1006
        %v1014 = vrot.slane %v1013, 4
        %v1015 = vadd.f32 %v1013, %v1014
        %v1016 = vrot.slane %v1015, 2
        %v1017 = vadd.f32 %v1015, %v1016
        %v1018 = vrot.slane %v1017, 1
        %v1019 = vadd.f32 %v1017, %v1018
        %v1020 = vadd.f32 %v1009, %v1012
        %v1021 = vrot.slane %v1020, 4
        %v1022 = vadd.f32 %v1020, %v1021
        %v1023 = vrot.slane %v1022, 2
        %v1024 = vadd.f32 %v1022, %v1023
        %v1025 = vrot.slane %v1024, 1
        %v1026 = vadd.f32 %v1024, %v1025
        %v1027 = vrcp.pop %v1019
        %v1028 = vrcp.pop %v1026
        %v1029 = vmul.f32 %v994, %v1027
        %v1030 = vmul.f32 %v996, %v1027
        %v1031 = vmul.f32 %v998, %v1028
        %v1032 = vmul.f32 %v1000, %v1028
        %v1033 = vpack.c.bf16 %v1029, %v1029
        %v1034 = vpack.c.bf16 %v1030, %v1030
        %v1035 = vpack.c.bf16 %v1031, %v1031
        %v1036 = vpack.c.bf16 %v1032, %v1032
        %v1041 = vunpack.c.l.b16 %v1033
        %v1042 = vunpack.c.l.b16 %v1034
        %v1043 = vunpack.c.l.b16 %v1035
        %v1044 = vunpack.c.l.b16 %v1036
        %v1045 = vpack.c.b16 %v1042, %v1041
        %v1046 = vpack.c.b16 %v1044, %v1043
        %v1048 = vsel %vm962, %v1045, 0
        %v1051 = vsel %vm962, %v1046, 0
        %vm1053 = vcmask 1043456
        %v1055 = vsel %vm1053, %v901, 0
        %1057 = vmatpush.bf16.msra.mxu0 0
        %1058 = vmatpush.bf16.msra.mxu0 0
        %1059 = vmatpush.bf16.msra.mxu0 0
        %1060 = vmatpush.bf16.msra.mxu0 0
        %1061 = vmatpush.bf16.msra.mxu0 0
        %1062 = vmatpush.bf16.msra.mxu0 0
        %1063 = vmatpush.bf16.msra.mxu0 0
        %1064 = vmatpush.bf16.msra.mxu0 %v1055
        %1065 = vmatmul.bf16.gmra.mxu0 %v1048
        %v1066 = vpop.f32.mrf.mxu0
        %v1067 = vadd.f32 0.0, %v1066
        %v1068 = vpop.f32.mrf.mxu0
        %v1069 = vadd.f32 0.0, %v1068
        %1070 = vmatmul.bf16.gmra.mxu0 %v1051
        %v1071 = vpop.f32.mrf.mxu0
        %v1072 = vadd.f32 0.0, %v1071
        %v1073 = vpop.f32.mrf.mxu0
        %v1074 = vadd.f32 0.0, %v1073
        %1075 = vdwg.mxu0
        %v1076 = vmul.f32 %v1067, %v849
        %v1077 = vmul.f32 %v1069, %v850
        %v1078 = vmul.f32 %v1072, %v849
        %v1079 = vmul.f32 %v1074, %v850
        %v1080 = vadd.f32 %v1076, %v1077
        %v1081 = vrot.slane %v1080, 4
        %v1082 = vadd.f32 %v1080, %v1081
        %v1083 = vrot.slane %v1082, 2
        %v1084 = vadd.f32 %v1082, %v1083
        %v1085 = vrot.slane %v1084, 1
        %v1086 = vadd.f32 %v1084, %v1085
        %v1087 = vadd.f32 %v1078, %v1079
        %v1088 = vrot.slane %v1087, 4
        %v1089 = vadd.f32 %v1087, %v1088
        %v1090 = vrot.slane %v1089, 2
        %v1091 = vadd.f32 %v1089, %v1090
        %v1092 = vrot.slane %v1091, 1
        %v1093 = vadd.f32 %v1091, %v1092
        %v1094 = vpack.c.bf16 %v1086, %v1086
        %v1095 = vld [vmem:[#allocation10] sm:$0xf]
        %v1096 = vld [vmem:[#allocation10 + $0x4] sm:$0xf]
        %v1097 = vld [vmem:[#allocation10 + $0x8] sm:$0xf]
        %v1098 = vld [vmem:[#allocation10 + $0xc] sm:$0xf]
        %v1099 = vld [vmem:[#allocation10 + $0x10] sm:$0xf]
        %v1100 = vld [vmem:[#allocation10 + $0x14] sm:$0xf]
        %v1101 = vld [vmem:[#allocation10 + $0x18] sm:$0xf]
        %v1102 = vld [vmem:[#allocation10 + $0x1c] sm:$0xf]
        %v1103 = vld [vmem:[#allocation10 + $0x20] sm:$0xf]
        %v1104 = vld [vmem:[#allocation10 + $0x24] sm:$0xf]
        %v1105 = vld [vmem:[#allocation10 + $0x28] sm:$0xf]
        %v1106 = vld [vmem:[#allocation10 + $0x2c] sm:$0xf]
        %v1107 = vld [vmem:[#allocation10 + $0x30] sm:$0xf]
        %v1108 = vld [vmem:[#allocation10 + $0x34] sm:$0xf]
        %v1109 = vld [vmem:[#allocation10 + $0x38] sm:$0xf]
        %v1110 = vld [vmem:[#allocation10 + $0x3c] sm:$0xf]
        %v1127 = vunpack.c.l.b16 %v1095
        %v1128 = vunpack.c.l.b16 %v1096
        %v1129 = vunpack.c.l.b16 %v1097
        %v1130 = vunpack.c.l.b16 %v1098
        %v1131 = vunpack.c.l.b16 %v1099
        %v1132 = vunpack.c.l.b16 %v1100
        %v1133 = vunpack.c.l.b16 %v1101
        %v1134 = vunpack.c.l.b16 %v1102
        %v1135 = vunpack.c.l.b16 %v1103
        %v1136 = vunpack.c.l.b16 %v1104
        %v1137 = vunpack.c.l.b16 %v1105
        %v1138 = vunpack.c.l.b16 %v1106
        %v1139 = vunpack.c.l.b16 %v1107
        %v1140 = vunpack.c.l.b16 %v1108
        %v1141 = vunpack.c.l.b16 %v1109
        %v1142 = vunpack.c.l.b16 %v1110
        %v1143 = vpack.c.b16 %v1128, %v1127
        %v1144 = vpack.c.b16 %v1130, %v1129
        %v1145 = vpack.c.b16 %v1132, %v1131
        %v1146 = vpack.c.b16 %v1134, %v1133
        %v1147 = vpack.c.b16 %v1136, %v1135
        %v1148 = vpack.c.b16 %v1138, %v1137
        %v1149 = vpack.c.b16 %v1140, %v1139
        %v1150 = vpack.c.b16 %v1142, %v1141
        %1159 = vmatpush.bf16.msra.mxu0 %v1150
        %1160 = vmatpush.bf16.msra.mxu0 %v1149
        %1161 = vmatpush.bf16.msra.mxu0 %v1148
        %1162 = vmatpush.bf16.msra.mxu0 %v1147
        %1163 = vmatpush.bf16.msra.mxu0 %v1146
        %1164 = vmatpush.bf16.msra.mxu0 %v1145
        %1165 = vmatpush.bf16.msra.mxu0 %v1144
        %1166 = vmatpush.bf16.msra.mxu0 %v1143
        %1167 = vmatmul.bf16.gmra.mxu0 %v1094
        %v1168 = vpop.f32.mrf.mxu0
        %v1169 = vadd.f32 0.0, %v1168
        %v1170 = vpop.f32.mrf.mxu0
        %1171 = vdwg.mxu0
        %v1172 = vmax.f32 %v1169, 0.0
        %v1173 = vadd.f32 %v915, %v1172
        %v1174 = vpack.c.bf16 %v1093, %v1093
        %s1175 = scalar_lea.vmem [#allocation10], 64
        %v1176 = vld [vmem:[%s1175] sm:$0xf]
        %v1177 = vld [vmem:[%s1175 + $0x4] sm:$0xf]
        %v1178 = vld [vmem:[%s1175 + $0x8] sm:$0xf]
        %v1179 = vld [vmem:[%s1175 + $0xc] sm:$0xf]
        %v1180 = vld [vmem:[%s1175 + $0x10] sm:$0xf]
        %v1181 = vld [vmem:[%s1175 + $0x14] sm:$0xf]
        %v1182 = vld [vmem:[%s1175 + $0x18] sm:$0xf]
        %v1183 = vld [vmem:[%s1175 + $0x1c] sm:$0xf]
        %v1184 = vld [vmem:[%s1175 + $0x20] sm:$0xf]
        %v1185 = vld [vmem:[%s1175 + $0x24] sm:$0xf]
        %v1186 = vld [vmem:[%s1175 + $0x28] sm:$0xf]
        %v1187 = vld [vmem:[%s1175 + $0x2c] sm:$0xf]
        %v1188 = vld [vmem:[%s1175 + $0x30] sm:$0xf]
        %v1189 = vld [vmem:[%s1175 + $0x34] sm:$0xf]
        %v1190 = vld [vmem:[%s1175 + $0x38] sm:$0xf]
        %v1191 = vld [vmem:[%s1175 + $0x3c] sm:$0xf]
        %v1208 = vunpack.c.l.b16 %v1176
        %v1209 = vunpack.c.l.b16 %v1177
        %v1210 = vunpack.c.l.b16 %v1178
        %v1211 = vunpack.c.l.b16 %v1179
        %v1212 = vunpack.c.l.b16 %v1180
        %v1213 = vunpack.c.l.b16 %v1181
        %v1214 = vunpack.c.l.b16 %v1182
        %v1215 = vunpack.c.l.b16 %v1183
        %v1216 = vunpack.c.l.b16 %v1184
        %v1217 = vunpack.c.l.b16 %v1185
        %v1218 = vunpack.c.l.b16 %v1186
        %v1219 = vunpack.c.l.b16 %v1187
        %v1220 = vunpack.c.l.b16 %v1188
        %v1221 = vunpack.c.l.b16 %v1189
        %v1222 = vunpack.c.l.b16 %v1190
        %v1223 = vunpack.c.l.b16 %v1191
        %v1224 = vpack.c.b16 %v1209, %v1208
        %v1225 = vpack.c.b16 %v1211, %v1210
        %v1226 = vpack.c.b16 %v1213, %v1212
        %v1227 = vpack.c.b16 %v1215, %v1214
        %v1228 = vpack.c.b16 %v1217, %v1216
        %v1229 = vpack.c.b16 %v1219, %v1218
        %v1230 = vpack.c.b16 %v1221, %v1220
        %v1231 = vpack.c.b16 %v1223, %v1222
        %1240 = vmatpush.bf16.msra.mxu0 %v1231
        %1241 = vmatpush.bf16.msra.mxu0 %v1230
        %1242 = vmatpush.bf16.msra.mxu0 %v1229
        %1243 = vmatpush.bf16.msra.mxu0 %v1228
        %1244 = vmatpush.bf16.msra.mxu0 %v1227
        %1245 = vmatpush.bf16.msra.mxu0 %v1226
        %1246 = vmatpush.bf16.msra.mxu0 %v1225
        %1247 = vmatpush.bf16.msra.mxu0 %v1224
        %1248 = vmatmul.bf16.gmra.mxu0 %v1174
        %v1249 = vpop.f32.mrf.mxu0
        %v1250 = vadd.f32 0.0, %v1249
        %v1251 = vpop.f32.mrf.mxu0
        %1252 = vdwg.mxu0
        %v1253 = vmax.f32 %v1250, 0.0
        %v1254 = vadd.f32 %v1173, %v1253
        %v1255 = vpack.c.bf16 %v1254, %v1254
        %v1256 = vld [vmem:[#allocation11] sm:$0xf]
        %v1257 = vld [vmem:[#allocation11 + $0x4] sm:$0xf]
        %v1258 = vld [vmem:[#allocation11 + $0x8] sm:$0xf]
        %v1259 = vld [vmem:[#allocation11 + $0xc] sm:$0xf]
        %v1260 = vld [vmem:[#allocation11 + $0x10] sm:$0xf]
        %v1261 = vld [vmem:[#allocation11 + $0x14] sm:$0xf]
        %v1262 = vld [vmem:[#allocation11 + $0x18] sm:$0xf]
        %v1263 = vld [vmem:[#allocation11 + $0x1c] sm:$0xf]
        %v1264 = vld [vmem:[#allocation11 + $0x20] sm:$0xf]
        %v1265 = vld [vmem:[#allocation11 + $0x24] sm:$0xf]
        %v1266 = vld [vmem:[#allocation11 + $0x28] sm:$0xf]
        %v1267 = vld [vmem:[#allocation11 + $0x2c] sm:$0xf]
        %v1268 = vld [vmem:[#allocation11 + $0x30] sm:$0xf]
        %v1269 = vld [vmem:[#allocation11 + $0x34] sm:$0xf]
        %v1270 = vld [vmem:[#allocation11 + $0x38] sm:$0xf]
        %v1271 = vld [vmem:[#allocation11 + $0x3c] sm:$0xf]
        %v1272 = vld [vmem:[%s11] sm:$0x1]
        %v1289 = vunpack.c.l.b16 %v1256
        %v1290 = vunpack.c.l.b16 %v1257
        %v1291 = vunpack.c.l.b16 %v1258
        %v1292 = vunpack.c.l.b16 %v1259
        %v1293 = vunpack.c.l.b16 %v1260
        %v1294 = vunpack.c.l.b16 %v1261
        %v1295 = vunpack.c.l.b16 %v1262
        %v1296 = vunpack.c.l.b16 %v1263
        %v1297 = vunpack.c.l.b16 %v1264
        %v1298 = vunpack.c.l.b16 %v1265
        %v1299 = vunpack.c.l.b16 %v1266
        %v1300 = vunpack.c.l.b16 %v1267
        %v1301 = vunpack.c.l.b16 %v1268
        %v1302 = vunpack.c.l.b16 %v1269
        %v1303 = vunpack.c.l.b16 %v1270
        %v1304 = vunpack.c.l.b16 %v1271
        %v1305 = vpack.c.b16 %v1290, %v1289
        %v1306 = vpack.c.b16 %v1292, %v1291
        %v1307 = vpack.c.b16 %v1294, %v1293
        %v1308 = vpack.c.b16 %v1296, %v1295
        %v1309 = vpack.c.b16 %v1298, %v1297
        %v1310 = vpack.c.b16 %v1300, %v1299
        %v1311 = vpack.c.b16 %v1302, %v1301
        %v1312 = vpack.c.b16 %v1304, %v1303
        %1321 = vmatpush.bf16.msra.mxu0 %v1312
        %1322 = vmatpush.bf16.msra.mxu0 %v1311
        %1323 = vmatpush.bf16.msra.mxu0 %v1310
        %1324 = vmatpush.bf16.msra.mxu0 %v1309
        %1325 = vmatpush.bf16.msra.mxu0 %v1308
        %1326 = vmatpush.bf16.msra.mxu0 %v1307
        %1327 = vmatpush.bf16.msra.mxu0 %v1306
        %1328 = vmatpush.bf16.msra.mxu0 %v1305
        %1329 = vmatmul.bf16.gmra.mxu0 %v1255
        %v1330 = vpop.f32.mrf.mxu0
        %v1331 = vadd.f32 %v1272, %v1330
        %v1332 = vpop.f32.mrf.mxu0
        %1333 = vdwg.mxu0
        %v1334 = vmax.f32 %v1331, 0.0
        %v1335 = vpack.c.bf16 %v1334, %v1334
        %v1336 = vld [vmem:[#allocation13] sm:$0xf]
        %v1337 = vld [vmem:[#allocation13 + $0x4] sm:$0xf]
        %v1338 = vld [vmem:[#allocation13 + $0x8] sm:$0xf]
        %v1339 = vld [vmem:[#allocation13 + $0xc] sm:$0xf]
        %v1340 = vld [vmem:[#allocation13 + $0x10] sm:$0xf]
        %v1341 = vld [vmem:[#allocation13 + $0x14] sm:$0xf]
        %v1342 = vld [vmem:[#allocation13 + $0x18] sm:$0xf]
        %v1343 = vld [vmem:[#allocation13 + $0x1c] sm:$0xf]
        %v1344 = vld [vmem:[#allocation13 + $0x20] sm:$0xf]
        %v1345 = vld [vmem:[#allocation13 + $0x24] sm:$0xf]
        %v1346 = vld [vmem:[#allocation13 + $0x28] sm:$0xf]
        %v1347 = vld [vmem:[#allocation13 + $0x2c] sm:$0xf]
        %v1348 = vld [vmem:[#allocation13 + $0x30] sm:$0xf]
        %v1349 = vld [vmem:[#allocation13 + $0x34] sm:$0xf]
        %v1350 = vld [vmem:[#allocation13 + $0x38] sm:$0xf]
        %v1351 = vld [vmem:[#allocation13 + $0x3c] sm:$0xf]
        %v1352 = vld [vmem:[%s13] sm:$0x1]
        %v1369 = vunpack.c.l.b16 %v1336
        %v1370 = vunpack.c.l.b16 %v1337
        %v1371 = vunpack.c.l.b16 %v1338
        %v1372 = vunpack.c.l.b16 %v1339
        %v1373 = vunpack.c.l.b16 %v1340
        %v1374 = vunpack.c.l.b16 %v1341
        %v1375 = vunpack.c.l.b16 %v1342
        %v1376 = vunpack.c.l.b16 %v1343
        %v1377 = vunpack.c.l.b16 %v1344
        %v1378 = vunpack.c.l.b16 %v1345
        %v1379 = vunpack.c.l.b16 %v1346
        %v1380 = vunpack.c.l.b16 %v1347
        %v1381 = vunpack.c.l.b16 %v1348
        %v1382 = vunpack.c.l.b16 %v1349
        %v1383 = vunpack.c.l.b16 %v1350
        %v1384 = vunpack.c.l.b16 %v1351
        %v1385 = vpack.c.b16 %v1370, %v1369
        %v1386 = vpack.c.b16 %v1372, %v1371
        %v1387 = vpack.c.b16 %v1374, %v1373
        %v1388 = vpack.c.b16 %v1376, %v1375
        %v1389 = vpack.c.b16 %v1378, %v1377
        %v1390 = vpack.c.b16 %v1380, %v1379
        %v1391 = vpack.c.b16 %v1382, %v1381
        %v1392 = vpack.c.b16 %v1384, %v1383
        %1401 = vmatpush.bf16.msra.mxu0 %v1392
        %1402 = vmatpush.bf16.msra.mxu0 %v1391
        %1403 = vmatpush.bf16.msra.mxu0 %v1390
        %1404 = vmatpush.bf16.msra.mxu0 %v1389
        %1405 = vmatpush.bf16.msra.mxu0 %v1388
        %1406 = vmatpush.bf16.msra.mxu0 %v1387
        %1407 = vmatpush.bf16.msra.mxu0 %v1386
        %1408 = vmatpush.bf16.msra.mxu0 %v1385
        %1409 = vmatmul.bf16.gmra.mxu0 %v1335
        %v1410 = vpop.f32.mrf.mxu0
        %v1411 = vadd.f32 %v1352, %v1410
        %v1412 = vpop.f32.mrf.mxu0
        %1413 = vdwg.mxu0
        %1414 = vst [vmem:[%s611] sm:$0x1] %v1411
        %s1415 = sand.u32 %s351, 1
        %s1416 = scalar_lea.sflag [#allocation4], %s1415
        %s1417 = sand.u32 %s351, 1
        %s1418 = scalar_lea.vmem [#allocation14], %s1417
        // Predicated region
        $region105: #{tpu_custom_call.1} parent=75 // pred_check
          %p1419 = pneg %p361
        $region106: #{tpu_custom_call.1} parent=75 // pred_check_branch
          %1421 = sbr.rel (%p1419) target = $region108
        $region107: #{tpu_custom_call.1} parent=75 // pred_region
          %1423 = vsyncadd %s1416, 0
          %s1424 = scalar_lea.hbm %s14, %s34
          %s1426 = sshll.u32 %s1418, 4
          %s1427 = int_to_ptr.vmem [resolvable:$true] %s1426
          %s1428 = sshll.u32 %s1424, 4
          %s1429 = int_to_ptr.hbm [resolvable:$true] %s1428
          %1431 = dma.vmem_to_hbm [thread:$0]  %s1427, 16, %s1429, %s1416
        $region108: #{tpu_custom_call.1} parent=75 // pred_fallthru
          _
      $region76: #{tpu_custom_call.1} parent=5 // pred_fallthru
        _
      %p1432 = scmp.le.s32.totalorder 2, %s29
      // Predicated region
      $region109: #{tpu_custom_call.1} parent=5 // pred_check
        %p1433 = pneg %p1432
      $region110: #{tpu_custom_call.1} parent=5 // pred_check_branch
        %1435 = sbr.rel (%p1433) target = $region112
      $region111: #{tpu_custom_call.1} parent=5 // pred_region
        %s1436 = ssub.s32 %s29, 2
        // Predicated region
        $region113: #{tpu_custom_call.1} parent=111 // pred_check
          %p1437 = pneg %p367
        $region114: #{tpu_custom_call.1} parent=111 // pred_check_branch
          %1439 = sbr.rel (%p1437) target = $region116
        $region115: #{tpu_custom_call.1} parent=111 // pred_region
          %s1440 = sand.u32 %s352, 1
          %s1441 = scalar_lea.sflag [#allocation4], %s1440
          %s1442 = sand.u32 %s352, 1
          %s1443 = scalar_lea.vmem [#allocation14], %s1442
          %1445 = dma.done %s1441, 16
        $region116: #{tpu_custom_call.1} parent=111 // pred_fallthru
          _
      $region112: #{tpu_custom_call.1} parent=5 // pred_fallthru
        _
    $region6: #{tpu_custom_call.1} parent=1 // loop_footer
      %s33 = sadd.s32 1, %s29
    $region7: #{tpu_custom_call.1} parent=1 // loop_footer_branch
      %28 = sbr.rel target = $region3
    $region8: #{tpu_custom_call.1} parent=1 // loop_exit
      _
    %1446 = vsyncpa [#allocation3], 1
    %s1447 = scalar_lea.sflag [#allocation3], 1
    %1448 = vsyncpa %s1447, 1
    %1449 = vsyncpa [#allocation6], 1
    %1450 = vsyncpa [#allocation9], 1
    %1451 = vsyncpa [#allocation12], 1
    %1452 = vsyncpa [#allocation4], 1
    %s1453 = scalar_lea.sflag [#allocation4], 1
    %1454 = vsyncpa %s1453, 1

</llo_original>
